<compile_context>
chip_gen: v5e
topology: v5e:2x2
jax: 0.10.0
libtpu: 0.0.40
codegen_flags: <defaults>
</compile_context>

<pallas_src>
import jax
import jax.numpy as jnp
from jax.experimental import pallas as pl
from jax.experimental.pallas import tpu as pltpu


def _fused_heads_kernel(x_ref, w1_ref, b1_ref, w2t_ref, b2_ref, out_ref,
                        xtile_ref):
    """All detection heads for one (batch element, row tile).

    x_ref:     (1, H, W, C)    bf16 feature frame of this batch element
    w1_ref:    (3, 3*C, HCp)   fused 3x3 weights, one (dx,cin)-major block per dy (bf16)
    b1_ref:    (1, HCp)        fused 3x3 bias, zero-padded to HCp (f32)
    w2t_ref:   (OUT, HCp)      block-diagonal, transposed 1x1 weights (bf16)
    b2_ref:    (OUT, 1)        fused 1x1 bias (f32)
    out_ref:   (1, OUT, TH*W)  channel-major output strip (f32)
    xtile_ref: (TH+2, W+2, C)  VMEM scratch: zero-padded haloed input tile (bf16)
    """
    H, W, C = x_ref.shape[1], x_ref.shape[2], x_ref.shape[3]
    TH = xtile_ref.shape[0] - 2
    HCp = w1_ref.shape[2]

    t = pl.program_id(1)
    nt = pl.num_programs(1)
    r0 = pl.multiple_of(t * TH, TH)          # first output row of this tile

    # ---- Assemble the zero-padded haloed tile in VMEM (fused padding). ----
    zcol = jnp.zeros((TH + 2, 1, C), xtile_ref.dtype)
    xtile_ref[:, 0:1, :] = zcol                       # left pad column
    xtile_ref[:, W + 1:W + 2, :] = zcol               # right pad column
    # Body rows (always valid).
    xtile_ref[1:TH + 1, 1:W + 1, :] = x_ref[0, pl.ds(r0, TH), :, :]
    # Top halo row: zeros at the image top edge, else the row above the tile.
    top = x_ref[0, pl.ds(jnp.maximum(r0 - 1, 0), 1), :, :]
    xtile_ref[0:1, 1:W + 1, :] = jnp.where(t > 0, top, jnp.zeros_like(top))
    # Bottom halo row: zeros at the image bottom edge, else the row below.
    bot = x_ref[0, pl.ds(jnp.minimum(r0 + TH, H - 1), 1), :, :]
    xtile_ref[TH + 1:TH + 2, 1:W + 1, :] = jnp.where(
        t < nt - 1, bot, jnp.zeros_like(bot))

    # ---- 3x3 conv for all heads: 3 accumulated K=3*C matmuls (f32 acc). ----
    acc = jnp.zeros((TH * W, HCp), jnp.float32)
    for dy in range(3):
        rows = xtile_ref[dy:dy + TH, :, :]            # (TH, W+2, C) bf16
        xs = jnp.concatenate(
            [rows[:, dx:dx + W, :] for dx in range(3)],
            axis=-1).reshape(TH * W, 3 * C)           # (TH*W, 3*C) bf16
        acc = acc + jnp.dot(xs, w1_ref[dy],
                            preferred_element_type=jnp.float32)
    y = jnp.maximum(acc + b1_ref[...], 0.0)           # bias + ReLU (f32)

    # ---- 1x1 conv for all heads, channel-major -> lane-dense store. ----
    out_t = jax.lax.dot_general(
        w2t_ref[...], y.astype(jnp.bfloat16),
        dimension_numbers=(((1,), (1,)), ((), ())),
        preferred_element_type=jnp.float32)           # (OUT, TH*W)
    out_ref[...] = (out_t + b2_ref[...])[None].astype(out_ref.dtype)


def run_fused_heads(x_nhwc, w1_all, b1_all, w2t_all, b2_all, row_tile):
    """x_nhwc (N,H,W,C) bf16 -> (N, OUT_total, H*W) f32 (channel-major)."""
    N, H, W, C = x_nhwc.shape
    HCp = w1_all.shape[2]
    OUT = w2t_all.shape[0]
    TH = min(row_tile, H)
    assert H % TH == 0, (H, TH)
    NT = H // TH

    grid_spec = pltpu.PrefetchScalarGridSpec(
        num_scalar_prefetch=0,
        grid=(N, NT),
        in_specs=[
            # Full frame of batch element n; constant over the row-tile axis so
            # it is DMA'd once per n and stays resident while its tiles run.
            pl.BlockSpec((1, H, W, C), lambda n, t: (n, 0, 0, 0)),
            # Weights/biases: constant index_maps -> VMEM-resident across grid.
            pl.BlockSpec((3, 3 * C, HCp), lambda n, t: (0, 0, 0)),
            pl.BlockSpec((1, HCp), lambda n, t: (0, 0)),
            pl.BlockSpec((OUT, HCp), lambda n, t: (0, 0)),
            pl.BlockSpec((OUT, 1), lambda n, t: (0, 0)),
        ],
        out_specs=pl.BlockSpec((1, OUT, TH * W), lambda n, t: (n, 0, t)),
        scratch_shapes=[pltpu.VMEM((TH + 2, W + 2, C), jnp.bfloat16)],
    )
    return pl.pallas_call(
        _fused_heads_kernel,
        out_shape=jax.ShapeDtypeStruct((N, OUT, H * W), jnp.float32),
        grid_spec=grid_spec,
        compiler_params=pltpu.CompilerParams(
            dimension_semantics=("parallel", "parallel")),
    )(x_nhwc, w1_all, b1_all, w2t_all, b2_all)


def init_head_params(key, in_ch, head_conv, num_out):
    """Deterministic synthetic parameters (PyTorch default-init style scale)."""
    k1, k2, k3, k4 = jax.random.split(key, 4)
    fan1 = in_ch * 3 * 3
    bound1 = 1.0 / jnp.sqrt(fan1)
    w1 = jax.random.uniform(k1, (3, 3, in_ch, head_conv), jnp.float32,
                            -bound1, bound1)
    b1 = jax.random.uniform(k2, (head_conv,), jnp.float32, -bound1, bound1)
    fan2 = head_conv
    bound2 = 1.0 / jnp.sqrt(fan2)
    w2 = jax.random.uniform(k3, (head_conv, num_out), jnp.float32,
                            -bound2, bound2)
    b2 = jax.random.uniform(k4, (num_out,), jnp.float32, -bound2, bound2)
    return w1, b1, w2, b2


def pack_head_params(params, head_order, heads, head_conv, hc_pad=256):
    """Fuse per-head params for the single fused kernel.

    Returns:
      w1_all  (3, 3*C, hc_pad)      bf16  per-dy 3x3 weight blocks, (dx,cin)-major rows
      b1_all  (1, hc_pad)           f32   fused 3x3 bias, zero-padded
      w2t_all (OUT_total, hc_pad)   bf16  block-diagonal, transposed 1x1 weights
      b2_all  (OUT_total, 1)        f32
    """
    HC = len(head_order) * head_conv
    assert hc_pad >= HC
    OUT = sum(heads[h] for h in head_order)
    C = params[head_order[0]][0].shape[2]

    w1 = jnp.concatenate([params[h][0] for h in head_order], axis=3)  # (3,3,C,HC)
    w1 = jnp.pad(w1, ((0, 0), (0, 0), (0, 0), (0, hc_pad - HC)))
    w1 = w1.reshape(3, 3 * C, hc_pad)          # row index = dx*C + cin per dy block
    b1 = jnp.concatenate([params[h][1] for h in head_order])
    b1 = jnp.pad(b1, (0, hc_pad - HC)).reshape(1, hc_pad)

    w2t = jnp.zeros((OUT, hc_pad), jnp.float32)
    b2_list = []
    off = 0
    for i, h in enumerate(head_order):
        w2, b2 = params[h][2], params[h][3]
        nout = heads[h]
        w2t = w2t.at[off:off + nout,
                     i * head_conv:(i + 1) * head_conv].set(w2.T)
        b2_list.append(b2)
        off += nout
    b2 = jnp.concatenate(b2_list).reshape(OUT, 1)
    return (w1.astype(jnp.bfloat16), b1.astype(jnp.float32),
            w2t.astype(jnp.bfloat16), b2.astype(jnp.float32))


def pose_resnet_heads(x_nchw, params, heads, head_conv=64, row_tile=8):
    """Forward pass of the PoseResNet head stack.

    x_nchw: (N, 64, H, W) backbone feature map (NCHW, matching PyTorch).
    Returns [dict(head -> (N, num_out, H, W))], matching the module's output.
    """
    # Cast to bf16 in the wrapper: MXU operands are bf16 anyway; halves the
    # HBM read and the input VMEM footprint.
    x_nhwc = jnp.transpose(x_nchw, (0, 2, 3, 1)).astype(jnp.bfloat16)
    N, H, W, _ = x_nhwc.shape
    head_order = sorted(heads)
    w1_all, b1_all, w2t_all, b2_all = pack_head_params(
        params, head_order, heads, head_conv)
    out_flat = run_fused_heads(x_nhwc, w1_all, b1_all, w2t_all, b2_all,
                               row_tile)
    out_nchw = out_flat.reshape(N, -1, H, W)     # already NCHW, no transpose
    ret = {}
    off = 0
    for h in head_order:
        ret[h] = out_nchw[:, off:off + heads[h]]
        off += heads[h]
    return [ret]


def _reference_head(x_nhwc, w1, b1, w2, b2):
    """Pure-JAX f32 reference for numerical check."""
    y = jax.lax.conv_general_dilated(
        x_nhwc, w1, window_strides=(1, 1), padding="SAME",
        dimension_numbers=("NHWC", "HWIO", "NHWC"))
    y = jax.nn.relu(y + b1)
    out = jnp.einsum("nhwc,co->nhwo", y, w2) + b2
    return out


if __name__ == "__main__":
    heads = {"hm": 3, "reg": 2, "wh": 2}
    head_conv = 64
    in_ch = 64                  # fixed by the module: Conv2d(64, head_conv, ...)
    N, H, W = 2, 16, 16

    key = jax.random.PRNGKey(0)
    kx, kp = jax.random.split(key)
    # Stand-in for the external TorchIr backbone output (see TODO above).
    x = jax.random.normal(kx, (N, in_ch, H, W), jnp.float32)

    params = {}
    for i, head in enumerate(sorted(heads)):
        params[head] = init_head_params(jax.random.fold_in(kp, i),
                                        in_ch, head_conv, heads[head])

    out = pose_resnet_heads(x, params, heads, head_conv, row_tile=8)
    jax.block_until_ready(out)

    # Numerical check vs a pure-JAX f32 conv reference. The kernel uses bf16
    # MXU operands with f32 accumulation, so the tolerance is loosened.
    x_nhwc = jnp.transpose(x, (0, 2, 3, 1))
    for head in heads:
        w1, b1, w2, b2 = params[head]
        ref = _reference_head(x_nhwc, w1, b1, w2, b2)
        got = jnp.transpose(out[0][head], (0, 2, 3, 1))
        assert got.shape == (N, H, W, heads[head]), (head, got.shape)
        err = float(jnp.max(jnp.abs(got - ref)))
        assert err < 5e-2, (head, err)

    print("KERNEL_OK")
</pallas_src>

<mosaic_0001>
module attributes {stable_mosaic.version = 11 : i64} {
  func.func @_fused_heads_kernel(%arg0: i32, %arg1: i32, %arg2: memref<1x16x16x64xbf16, #tpu.memory_space<vmem>>, %arg3: memref<3x192x256xbf16, #tpu.memory_space<vmem>>, %arg4: memref<1x256xf32, #tpu.memory_space<vmem>>, %arg5: memref<7x256xbf16, #tpu.memory_space<vmem>>, %arg6: memref<7x1xf32, #tpu.memory_space<vmem>>, %arg7: memref<1x7x128xf32, #tpu.memory_space<vmem>>, %arg8: memref<10x18x64xbf16, #tpu.memory_space<vmem>>) attributes {dimension_semantics = [#tpu.dimension_semantics<parallel>, #tpu.dimension_semantics<parallel>], iteration_bounds = array<i64: 2, 2>, scalar_prefetch = 0 : i64, scratch_operands = 1 : i64, tpu.core_type = #tpu.core_type<tc>, window_params = [{transform_indices = @transform_0, window_bounds = array<i64: 1, 16, 16, 64>}, {pipeline_mode = #tpu.pipeline_mode<synchronous>, transform_indices = @transform_1, window_bounds = array<i64: 3, 192, 256>}, {pipeline_mode = #tpu.pipeline_mode<synchronous>, transform_indices = @transform_2, window_bounds = array<i64: 1, 256>}, {pipeline_mode = #tpu.pipeline_mode<synchronous>, transform_indices = @transform_3, window_bounds = array<i64: 7, 256>}, {pipeline_mode = #tpu.pipeline_mode<synchronous>, transform_indices = @transform_4, window_bounds = array<i64: 7, 1>}, {transform_indices = @transform_5, window_bounds = array<i64: 1, 7, 128>}]} {
    %c8_i32 = arith.constant 8 : i32
    %0 = arith.muli %arg1, %c8_i32 : i32
    %1 = tpu.assume_multiple %0, 8 : i32
    %cst = arith.constant 0.000000e+00 : bf16
    %2 = vector.broadcast %cst : bf16 to vector<10x1x64xbf16>
    %c0 = arith.constant 0 : index
    %c0_0 = arith.constant 0 : index
    %c0_1 = arith.constant 0 : index
    %3 = vector.load %arg8[%c0, %c0_0, %c0_1] : memref<10x18x64xbf16, #tpu.memory_space<vmem>>, vector<10x1x64xbf16>
    tpu.vector_store %arg8[%c0, %c0_0, %c0_1], %2 {strides = array<i32>} : memref<10x18x64xbf16, #tpu.memory_space<vmem>>, vector<10x1x64xbf16>,
    %c0_2 = arith.constant 0 : index
    %c17 = arith.constant 17 : index
    %c0_3 = arith.constant 0 : index
    %4 = vector.load %arg8[%c0_2, %c17, %c0_3] : memref<10x18x64xbf16, #tpu.memory_space<vmem>>, vector<10x1x64xbf16>
    tpu.vector_store %arg8[%c0_2, %c17, %c0_3], %2 {strides = array<i32>} : memref<10x18x64xbf16, #tpu.memory_space<vmem>>, vector<10x1x64xbf16>,
    %c0_4 = arith.constant 0 : index
    %5 = arith.index_cast %1 : i32 to index
    %c0_5 = arith.constant 0 : index
    %c0_6 = arith.constant 0 : index
    %6 = vector.load %arg2[%c0_4, %5, %c0_5, %c0_6] : memref<1x16x16x64xbf16, #tpu.memory_space<vmem>>, vector<1x8x16x64xbf16>
    %7 = vector.shape_cast %6 : vector<1x8x16x64xbf16> to vector<8x16x64xbf16>
    %c1 = arith.constant 1 : index
    %c1_7 = arith.constant 1 : index
    %c0_8 = arith.constant 0 : index
    %8 = vector.load %arg8[%c1, %c1_7, %c0_8] : memref<10x18x64xbf16, #tpu.memory_space<vmem>>, vector<8x16x64xbf16>
    tpu.vector_store %arg8[%c1, %c1_7, %c0_8], %7 {strides = array<i32>} : memref<10x18x64xbf16, #tpu.memory_space<vmem>>, vector<8x16x64xbf16>,
    %c1_i32 = arith.constant 1 : i32
    %9 = arith.subi %1, %c1_i32 : i32
    %c0_i32 = arith.constant 0 : i32
    %10 = arith.maxsi %9, %c0_i32 : i32
    %c0_9 = arith.constant 0 : index
    %11 = arith.index_cast %10 : i32 to index
    %c0_10 = arith.constant 0 : index
    %c0_11 = arith.constant 0 : index
    %12 = vector.load %arg2[%c0_9, %11, %c0_10, %c0_11] : memref<1x16x16x64xbf16, #tpu.memory_space<vmem>>, vector<1x1x16x64xbf16>
    %13 = vector.shape_cast %12 : vector<1x1x16x64xbf16> to vector<1x16x64xbf16>
    %c0_i32_12 = arith.constant 0 : i32
    %14 = arith.cmpi sgt, %arg1, %c0_i32_12 : i32
    %cst_13 = arith.constant 0.000000e+00 : bf16
    %15 = vector.broadcast %cst_13 : bf16 to vector<1x16x64xbf16>
    %16 = arith.select %14, %13, %15 : vector<1x16x64xbf16>
    %c0_14 = arith.constant 0 : index
    %c1_15 = arith.constant 1 : index
    %c0_16 = arith.constant 0 : index
    %17 = vector.load %arg8[%c0_14, %c1_15, %c0_16] : memref<10x18x64xbf16, #tpu.memory_space<vmem>>, vector<1x16x64xbf16>
    tpu.vector_store %arg8[%c0_14, %c1_15, %c0_16], %16 {strides = array<i32>} : memref<10x18x64xbf16, #tpu.memory_space<vmem>>, vector<1x16x64xbf16>,
    %c8_i32_17 = arith.constant 8 : i32
    %18 = arith.addi %1, %c8_i32_17 : i32
    %c15_i32 = arith.constant 15 : i32
    %19 = arith.minsi %18, %c15_i32 : i32
    %c0_18 = arith.constant 0 : index
    %20 = arith.index_cast %19 : i32 to index
    %c0_19 = arith.constant 0 : index
    %c0_20 = arith.constant 0 : index
    %21 = vector.load %arg2[%c0_18, %20, %c0_19, %c0_20] : memref<1x16x16x64xbf16, #tpu.memory_space<vmem>>, vector<1x1x16x64xbf16>
    %22 = vector.shape_cast %21 : vector<1x1x16x64xbf16> to vector<1x16x64xbf16>
    %c1_i32_21 = arith.constant 1 : i32
    %23 = arith.cmpi slt, %arg1, %c1_i32_21 : i32
    %cst_22 = arith.constant 0.000000e+00 : bf16
    %24 = vector.broadcast %cst_22 : bf16 to vector<1x16x64xbf16>
    %25 = arith.select %23, %22, %24 : vector<1x16x64xbf16>
    %c9 = arith.constant 9 : index
    %c1_23 = arith.constant 1 : index
    %c0_24 = arith.constant 0 : index
    %26 = vector.load %arg8[%c9, %c1_23, %c0_24] : memref<10x18x64xbf16, #tpu.memory_space<vmem>>, vector<1x16x64xbf16>
    tpu.vector_store %arg8[%c9, %c1_23, %c0_24], %25 {strides = array<i32>} : memref<10x18x64xbf16, #tpu.memory_space<vmem>>, vector<1x16x64xbf16>,
    %cst_25 = arith.constant 0.000000e+00 : f32
    %27 = vector.broadcast %cst_25 : f32 to vector<128x256xf32>
    %c0_26 = arith.constant 0 : index
    %c0_27 = arith.constant 0 : index
    %c0_28 = arith.constant 0 : index
    %28 = vector.load %arg8[%c0_26, %c0_27, %c0_28] : memref<10x18x64xbf16, #tpu.memory_space<vmem>>, vector<8x18x64xbf16>
    %29 = vector.extract_strided_slice %28 {offsets = [0, 0, 0], sizes = [8, 16, 64], strides = [1, 1, 1]} : vector<8x18x64xbf16> to vector<8x16x64xbf16>
    %30 = vector.extract_strided_slice %28 {offsets = [0, 1, 0], sizes = [8, 16, 64], strides = [1, 1, 1]} : vector<8x18x64xbf16> to vector<8x16x64xbf16>
    %31 = vector.extract_strided_slice %28 {offsets = [0, 2, 0], sizes = [8, 16, 64], strides = [1, 1, 1]} : vector<8x18x64xbf16> to vector<8x16x64xbf16>
    %32 = tpu.concatenate %29, %30, %31 in 2 : vector<8x16x64xbf16>, vector<8x16x64xbf16>, vector<8x16x64xbf16> -> vector<8x16x192xbf16>
    %33 = vector.shape_cast %32 : vector<8x16x192xbf16> to vector<128x192xbf16>
    %c0_29 = arith.constant 0 : index
    %c0_30 = arith.constant 0 : index
    %c0_31 = arith.constant 0 : index
    %34 = vector.load %arg3[%c0_29, %c0_30, %c0_31] : memref<3x192x256xbf16, #tpu.memory_space<vmem>>, vector<1x192x256xbf16>
    %35 = vector.shape_cast %34 : vector<1x192x256xbf16> to vector<192x256xbf16>
    %cst_32 = arith.constant dense<0.000000e+00> : vector<128x256xf32>
    %36 = tpu.matmul %33, %35, %cst_32 {dimension_numbers = #tpu.dot_dimension_numbers<[1], [0], [0], [1], [0, 0, 1, 1], [], []>} : vector<128x192xbf16>, vector<192x256xbf16>, vector<128x256xf32> -> vector<128x256xf32>
    %37 = arith.addf %27, %36 : vector<128x256xf32>
    %c1_33 = arith.constant 1 : index
    %c0_34 = arith.constant 0 : index
    %c0_35 = arith.constant 0 : index
    %38 = vector.load %arg8[%c1_33, %c0_34, %c0_35] : memref<10x18x64xbf16, #tpu.memory_space<vmem>>, vector<8x18x64xbf16>
    %39 = vector.extract_strided_slice %38 {offsets = [0, 0, 0], sizes = [8, 16, 64], strides = [1, 1, 1]} : vector<8x18x64xbf16> to vector<8x16x64xbf16>
    %40 = vector.extract_strided_slice %38 {offsets = [0, 1, 0], sizes = [8, 16, 64], strides = [1, 1, 1]} : vector<8x18x64xbf16> to vector<8x16x64xbf16>
    %41 = vector.extract_strided_slice %38 {offsets = [0, 2, 0], sizes = [8, 16, 64], strides = [1, 1, 1]} : vector<8x18x64xbf16> to vector<8x16x64xbf16>
    %42 = tpu.concatenate %39, %40, %41 in 2 : vector<8x16x64xbf16>, vector<8x16x64xbf16>, vector<8x16x64xbf16> -> vector<8x16x192xbf16>
    %43 = vector.shape_cast %42 : vector<8x16x192xbf16> to vector<128x192xbf16>
    %c1_36 = arith.constant 1 : index
    %c0_37 = arith.constant 0 : index
    %c0_38 = arith.constant 0 : index
    %44 = vector.load %arg3[%c1_36, %c0_37, %c0_38] : memref<3x192x256xbf16, #tpu.memory_space<vmem>>, vector<1x192x256xbf16>
    %45 = vector.shape_cast %44 : vector<1x192x256xbf16> to vector<192x256xbf16>
    %cst_39 = arith.constant dense<0.000000e+00> : vector<128x256xf32>
    %46 = tpu.matmul %43, %45, %cst_39 {dimension_numbers = #tpu.dot_dimension_numbers<[1], [0], [0], [1], [0, 0, 1, 1], [], []>} : vector<128x192xbf16>, vector<192x256xbf16>, vector<128x256xf32> -> vector<128x256xf32>
    %47 = arith.addf %37, %46 : vector<128x256xf32>
    %c2 = arith.constant 2 : index
    %c0_40 = arith.constant 0 : index
    %c0_41 = arith.constant 0 : index
    %48 = vector.load %arg8[%c2, %c0_40, %c0_41] : memref<10x18x64xbf16, #tpu.memory_space<vmem>>, vector<8x18x64xbf16>
    %49 = vector.extract_strided_slice %48 {offsets = [0, 0, 0], sizes = [8, 16, 64], strides = [1, 1, 1]} : vector<8x18x64xbf16> to vector<8x16x64xbf16>
    %50 = vector.extract_strided_slice %48 {offsets = [0, 1, 0], sizes = [8, 16, 64], strides = [1, 1, 1]} : vector<8x18x64xbf16> to vector<8x16x64xbf16>
    %51 = vector.extract_strided_slice %48 {offsets = [0, 2, 0], sizes = [8, 16, 64], strides = [1, 1, 1]} : vector<8x18x64xbf16> to vector<8x16x64xbf16>
    %52 = tpu.concatenate %49, %50, %51 in 2 : vector<8x16x64xbf16>, vector<8x16x64xbf16>, vector<8x16x64xbf16> -> vector<8x16x192xbf16>
    %53 = vector.shape_cast %52 : vector<8x16x192xbf16> to vector<128x192xbf16>
    %c2_42 = arith.constant 2 : index
    %c0_43 = arith.constant 0 : index
    %c0_44 = arith.constant 0 : index
    %54 = vector.load %arg3[%c2_42, %c0_43, %c0_44] : memref<3x192x256xbf16, #tpu.memory_space<vmem>>, vector<1x192x256xbf16>
    %55 = vector.shape_cast %54 : vector<1x192x256xbf16> to vector<192x256xbf16>
    %cst_45 = arith.constant dense<0.000000e+00> : vector<128x256xf32>
    %56 = tpu.matmul %53, %55, %cst_45 {dimension_numbers = #tpu.dot_dimension_numbers<[1], [0], [0], [1], [0, 0, 1, 1], [], []>} : vector<128x192xbf16>, vector<192x256xbf16>, vector<128x256xf32> -> vector<128x256xf32>
    %57 = arith.addf %47, %56 : vector<128x256xf32>
    %c0_46 = arith.constant 0 : index
    %c0_47 = arith.constant 0 : index
    %58 = vector.load %arg4[%c0_46, %c0_47] : memref<1x256xf32, #tpu.memory_space<vmem>>, vector<1x256xf32>
    %59 = vector.broadcast %58 : vector<1x256xf32> to vector<128x256xf32>
    %60 = arith.addf %57, %59 : vector<128x256xf32>
    %cst_48 = arith.constant 0.000000e+00 : f32
    %61 = vector.broadcast %cst_48 : f32 to vector<128x256xf32>
    %62 = arith.maximumf %60, %61 : vector<128x256xf32>
    %c0_49 = arith.constant 0 : index
    %c0_50 = arith.constant 0 : index
    %63 = vector.load %arg5[%c0_49, %c0_50] : memref<7x256xbf16, #tpu.memory_space<vmem>>, vector<7x256xbf16>
    %64 = arith.truncf %62 : vector<128x256xf32> to vector<128x256xbf16>
    %cst_51 = arith.constant dense<0.000000e+00> : vector<7x128xf32>
    %65 = tpu.matmul %63, %64, %cst_51 {dimension_numbers = #tpu.dot_dimension_numbers<[1], [1], [0], [0], [0, 0, 1, 0], [], []>} : vector<7x256xbf16>, vector<128x256xbf16>, vector<7x128xf32> -> vector<7x128xf32>
    %c0_52 = arith.constant 0 : index
    %c0_53 = arith.constant 0 : index
    %66 = vector.load %arg6[%c0_52, %c0_53] : memref<7x1xf32, #tpu.memory_space<vmem>>, vector<7x1xf32>
    %67 = vector.broadcast %66 : vector<7x1xf32> to vector<7x128xf32>
    %68 = arith.addf %65, %67 : vector<7x128xf32>
    %69 = vector.shape_cast %68 : vector<7x128xf32> to vector<1x7x128xf32>
    %c0_54 = arith.constant 0 : index
    %c0_55 = arith.constant 0 : index
    %c0_56 = arith.constant 0 : index
    %70 = vector.load %arg7[%c0_54, %c0_55, %c0_56] : memref<1x7x128xf32, #tpu.memory_space<vmem>>, vector<1x7x128xf32>
    tpu.vector_store %arg7[%c0_54, %c0_55, %c0_56], %69 {strides = array<i32>} : memref<1x7x128xf32, #tpu.memory_space<vmem>>, vector<1x7x128xf32>,
    return
  }
  func.func @transform_0(%arg0: i32, %arg1: i32) -> (i32, i32, i32, i32) {
    %c0_i32 = arith.constant 0 : i32
    %c0_i32_0 = arith.constant 0 : i32
    %c0_i32_1 = arith.constant 0 : i32
    %c0_i32_2 = arith.constant 0 : i32
    return %arg0, %c0_i32, %c0_i32_0, %c0_i32_1 : i32, i32, i32, i32
  }
  func.func @transform_1(%arg0: i32, %arg1: i32) -> (i32, i32, i32) {
    %c0_i32 = arith.constant 0 : i32
    %c0_i32_0 = arith.constant 0 : i32
    %c0_i32_1 = arith.constant 0 : i32
    %c0_i32_2 = arith.constant 0 : i32
    return %c0_i32, %c0_i32_0, %c0_i32_1 : i32, i32, i32
  }
  func.func @transform_2(%arg0: i32, %arg1: i32) -> (i32, i32) {
    %c0_i32 = arith.constant 0 : i32
    %c0_i32_0 = arith.constant 0 : i32
    %c0_i32_1 = arith.constant 0 : i32
    return %c0_i32, %c0_i32_0 : i32, i32
  }
  func.func @transform_3(%arg0: i32, %arg1: i32) -> (i32, i32) {
    %c0_i32 = arith.constant 0 : i32
    %c0_i32_0 = arith.constant 0 : i32
    %c0_i32_1 = arith.constant 0 : i32
    return %c0_i32, %c0_i32_0 : i32, i32
  }
  func.func @transform_4(%arg0: i32, %arg1: i32) -> (i32, i32) {
    %c0_i32 = arith.constant 0 : i32
    %c0_i32_0 = arith.constant 0 : i32
    %c0_i32_1 = arith.constant 0 : i32
    return %c0_i32, %c0_i32_0 : i32, i32
  }
  func.func @transform_5(%arg0: i32, %arg1: i32) -> (i32, i32, i32) {
    %c0_i32 = arith.constant 0 : i32
    %c0_i32_0 = arith.constant 0 : i32
    return %arg0, %c0_i32, %arg1 : i32, i32, i32
  }
}

</mosaic_0001>

<llo_original>
// kernel: tpu_custom_call.1
$region0: #{tpu_custom_call.1}
  #allocation0 [shape = 'u32[]', space=smem, size = 0x4, offset = 0x4, fixed_abs, tag = 'smem constant byte address 0x4 - core index']
  #allocation1 [shape = 'u32[72,128]{1,0:T(1,128)}', space=vmem, size = 0x9000, scoped, tag = 'internal scratch']
  #allocation2 [shape = 'bf16[10,18,64]{2,1,0:T(8,128)(2,1)}', space=vmem, size = 0xf000, scoped, tag = 'scratch operand']
  %s0 = inlined_call_operand.hbm [shape: bf16[2,16,16,64], index: 0, kind: input, shape index: {}]
  %s1 = inlined_call_operand.hbm [shape: bf16[3,192,256], index: 1, kind: input, shape index: {}]
  %s2 = inlined_call_operand.hbm [shape: f32[1,256], index: 2, kind: input, shape index: {}]
  %s3 = inlined_call_operand.vmem [shape: bf16[7,256], index: 3, kind: input, shape index: {}]
  %s4 = inlined_call_operand.vmem [shape: f32[7,1], index: 4, kind: input, shape index: {}]
  %s5 = inlined_call_operand.vmem [shape: f32[2,7,256], index: 5, kind: output, shape index: {}]
  %s6 = sld [smem:[#allocation0]]
  $region65: #{tpu_custom_call.1} parent=0
    _
  %s8 = ssub.s32 1, %s6
  %s9 = scalar_select 0, %s8, %s6
  $region1: #{tpu_custom_call.1} parent=0
    #allocation3 [shape = 'u8[131072]{0}', space=vmem, size = 0x20000, scoped, tag = 'input window, operand 0']
    #allocation4 [shape = 's32[2]{0}', space=sflag, size = 0x8, scoped, tag = 'scoped memory for tpu_custom_call.1']
    #allocation5 [shape = 'u8[294912]{0}', space=vmem, size = 0x48000, scoped, tag = 'input window, operand 1, single buffered']
    #allocation6 [shape = 's32[1]{0}', space=sflag, size = 0x4, scoped, tag = 'scoped memory for tpu_custom_call.1']
    #allocation7 [shape = 'u8[1024]{0}', space=vmem, size = 0x400, scoped, tag = 'input window, operand 2, single buffered']
    %10 = vsyncpa [#allocation4], 0
    %s11 = scalar_lea.sflag [#allocation4], 1
    %12 = vsyncpa %s11, 0
    %13 = vsyncpa [#allocation6], 0
    loop: start=0, step=1, limit=6
    $region2: #{tpu_custom_call.1} parent=1 // loop_pre_header
      _
    $region3: #{tpu_custom_call.1} parent=1 // loop_header
      %s15 = sphi 0, %s19
      %p16 = scmp.ge.s32.totalorder %s15, 6
      %s22 = sphi 0, %s34
      %s23 = sphi 0, %s30
      %s24 = sphi 0, %s22
      %s25 = sphi 0, %s23
      %s26 = sphi 0, %s24
      %s27 = sphi 0, %s25
      %s37 = sphi 0, %s39
      %s40 = sphi 0, %s37
      %s41 = sphi 0, %s40
      %s57 = sphi 0, %s41
      %s61 = sphi 0, %s61
      %s63 = sphi 0, %s61
      %s64 = sphi 0, %s63
      %s78 = sphi 0, %s64
      %s82 = sphi 0, %s82
      %s84 = sphi 0, %s82
      %s85 = sphi 0, %s84
      %s99 = sphi 0, %s85
      %s103 = sphi 0, %s103
      %s105 = sphi 0, %s103
      %s106 = sphi 0, %s105
      %s120 = sphi 0, %s106
      %s124 = sphi 0, %s124
      %s126 = sphi 0, %s124
      %s127 = sphi 0, %s126
      %s141 = sphi 0, %s127
      %s149 = sphi 0, %s151
      %s152 = sphi 0, %s149
      %s153 = sphi 0, %s152
      %s169 = sphi 0, %s153
    $region4: #{tpu_custom_call.1} parent=1 // loop_header_branch
      %18 = sbr.rel (%p16) target = $region8
    $region5: #{tpu_custom_call.1} parent=1 // loop_body
      %s20 = ssub.s32 %s15, 1
      %s21 = ssub.s32 %s15, 2
      %s28 = sadd.s32 1, %s23
      %p29 = scmp.ge.s32.totalorder %s28, 2
      %s30 = scalar_select %p29, 0, %s28
      %s31 = sadd.s32 1, %s22
      %s32 = scalar_select %p29, %s31, %s22
      %p33 = scmp.ge.s32.totalorder %s32, 2
      %s34 = scalar_select %p33, 0, %s32
      %s35 = ssub.s32 %s22, %s34
      %p36 = scmp.eq.s32.totalorder %s35, 0
      %s38 = sadd.s32 %s37, 1
      %s39 = scalar_select %p36, %s37, %s38
      %p42 = pneg %p36
      %p43 = scmp.eq.s32.totalorder %s15, 3
      %p44 = por %p42, %p43
      %p45 = scmp.ne.s32.totalorder %s37, %s40
      %p46 = scmp.eq.s32.totalorder %s15, 0
      %p47 = por %p45, %p46
      %p48 = scmp.ne.s32.totalorder %s37, %s40
      %p49 = scmp.eq.s32.totalorder %s20, 3
      %p50 = por %p48, %p49
      %p51 = scmp.ne.s32.totalorder %s40, %s41
      %p52 = scmp.eq.s32.totalorder %s20, 0
      %p53 = por %p51, %p52
      %p54 = scmp.ne.s32.totalorder %s40, %s41
      %p55 = scmp.eq.s32.totalorder %s21, 3
      %p56 = por %p54, %p55
      %p58 = scmp.ne.s32.totalorder %s41, %s57
      %p59 = scmp.eq.s32.totalorder %s21, 0
      %p60 = por %p58, %p59
      %s62 = sadd.s32 %s61, 1
      %p65 = scmp.eq.s32.totalorder %s15, 3
      %p66 = scmp.ne.s32.totalorder %s61, %s63
      %p67 = scmp.eq.s32.totalorder %s15, 0
      %p68 = por %p66, %p67
      %p69 = scmp.ne.s32.totalorder %s61, %s63
      %p70 = scmp.eq.s32.totalorder %s20, 3
      %p71 = por %p69, %p70
      %p72 = scmp.ne.s32.totalorder %s63, %s64
      %p73 = scmp.eq.s32.totalorder %s20, 0
      %p74 = por %p72, %p73
      %p75 = scmp.ne.s32.totalorder %s63, %s64
      %p76 = scmp.eq.s32.totalorder %s21, 3
      %p77 = por %p75, %p76
      %p79 = scmp.ne.s32.totalorder %s64, %s78
      %p80 = scmp.eq.s32.totalorder %s21, 0
      %p81 = por %p79, %p80
      %s83 = sadd.s32 %s82, 1
      %p86 = scmp.eq.s32.totalorder %s15, 3
      %p87 = scmp.ne.s32.totalorder %s82, %s84
      %p88 = scmp.eq.s32.totalorder %s15, 0
      %p89 = por %p87, %p88
      %p90 = scmp.ne.s32.totalorder %s82, %s84
      %p91 = scmp.eq.s32.totalorder %s20, 3
      %p92 = por %p90, %p91
      %p93 = scmp.ne.s32.totalorder %s84, %s85
      %p94 = scmp.eq.s32.totalorder %s20, 0
      %p95 = por %p93, %p94
      %p96 = scmp.ne.s32.totalorder %s84, %s85
      %p97 = scmp.eq.s32.totalorder %s21, 3
      %p98 = por %p96, %p97
      %p100 = scmp.ne.s32.totalorder %s85, %s99
      %p101 = scmp.eq.s32.totalorder %s21, 0
      %p102 = por %p100, %p101
      %s104 = sadd.s32 %s103, 1
      %p107 = scmp.eq.s32.totalorder %s15, 3
      %p108 = scmp.ne.s32.totalorder %s103, %s105
      %p109 = scmp.eq.s32.totalorder %s15, 0
      %p110 = por %p108, %p109
      %p111 = scmp.ne.s32.totalorder %s103, %s105
      %p112 = scmp.eq.s32.totalorder %s20, 3
      %p113 = por %p111, %p112
      %p114 = scmp.ne.s32.totalorder %s105, %s106
      %p115 = scmp.eq.s32.totalorder %s20, 0
      %p116 = por %p114, %p115
      %p117 = scmp.ne.s32.totalorder %s105, %s106
      %p118 = scmp.eq.s32.totalorder %s21, 3
      %p119 = por %p117, %p118
      %p121 = scmp.ne.s32.totalorder %s106, %s120
      %p122 = scmp.eq.s32.totalorder %s21, 0
      %p123 = por %p121, %p122
      %s125 = sadd.s32 %s124, 1
      %p128 = scmp.eq.s32.totalorder %s15, 3
      %p129 = scmp.ne.s32.totalorder %s124, %s126
      %p130 = scmp.eq.s32.totalorder %s15, 0
      %p131 = por %p129, %p130
      %p132 = scmp.ne.s32.totalorder %s124, %s126
      %p133 = scmp.eq.s32.totalorder %s20, 3
      %p134 = por %p132, %p133
      %p135 = scmp.ne.s32.totalorder %s126, %s127
      %p136 = scmp.eq.s32.totalorder %s20, 0
      %p137 = por %p135, %p136
      %p138 = scmp.ne.s32.totalorder %s126, %s127
      %p139 = scmp.eq.s32.totalorder %s21, 3
      %p140 = por %p138, %p139
      %p142 = scmp.ne.s32.totalorder %s127, %s141
      %p143 = scmp.eq.s32.totalorder %s21, 0
      %p144 = por %p142, %p143
      %s145 = ssub.s32 %s22, %s34
      %s146 = ssub.s32 %s23, %s30
      %s147 = sor.u32 %s145, %s146
      %p148 = scmp.eq.s32.totalorder %s147, 0
      %s150 = sadd.s32 %s149, 1
      %s151 = scalar_select %p148, %s149, %s150
      %p154 = pneg %p148
      %p155 = scmp.eq.s32.totalorder %s15, 3
      %p156 = por %p154, %p155
      %p157 = scmp.ne.s32.totalorder %s149, %s152
      %p158 = scmp.eq.s32.totalorder %s15, 0
      %p159 = por %p157, %p158
      %p160 = scmp.ne.s32.totalorder %s149, %s152
      %p161 = scmp.eq.s32.totalorder %s20, 3
      %p162 = por %p160, %p161
      %p163 = scmp.ne.s32.totalorder %s152, %s153
      %p164 = scmp.eq.s32.totalorder %s20, 0
      %p165 = por %p163, %p164
      %p166 = scmp.ne.s32.totalorder %s152, %s153
      %p167 = scmp.eq.s32.totalorder %s21, 3
      %p168 = por %p166, %p167
      %p170 = scmp.ne.s32.totalorder %s153, %s169
      %p171 = scmp.eq.s32.totalorder %s21, 0
      %p172 = por %p170, %p171
      %p173 = scmp.le.s32.totalorder 1, %s15
      %p174 = scmp.lt.s32.totalorder %s15, 5
      %p175 = pnand %p173, %p174
      %p176 = pneg %p175
      // Predicated region
      $region9: #{tpu_custom_call.1} parent=5 // pred_check
        _
      $region10: #{tpu_custom_call.1} parent=5 // pred_check_branch
        %178 = sbr.rel (%p175) target = $region12
      $region11: #{tpu_custom_call.1} parent=5 // pred_region
        %s179 = ssub.s32 %s15, 1
        // Predicated region
        $region13: #{tpu_custom_call.1} parent=11 // pred_check
          %p180 = pneg %p74
        $region14: #{tpu_custom_call.1} parent=11 // pred_check_branch
          %182 = sbr.rel (%p180) target = $region16
        $region15: #{tpu_custom_call.1} parent=11 // pred_region
          %184 = vsyncadd [#allocation6], 0
          %s185 = sshll.u32 %s1, 4
          %s186 = int_to_ptr.hbm [resolvable:$true] %s185
          %s187 = sshll.u32 [#allocation5], 4
          %s188 = int_to_ptr.vmem [resolvable:$true] %s187
          %193 = dma.hbm_to_vmem [thread:$0]  %s186, 9216, %s188, [#allocation6], 128, 128, 8
        $region16: #{tpu_custom_call.1} parent=11 // pred_fallthru
          _
        // Predicated region
        $region17: #{tpu_custom_call.1} parent=11 // pred_check
          %p194 = pneg %p95
        $region18: #{tpu_custom_call.1} parent=11 // pred_check_branch
          %196 = sbr.rel (%p194) target = $region20
        $region19: #{tpu_custom_call.1} parent=11 // pred_region
          %198 = vsyncadd [#allocation6], 0
          %s200 = sshll.u32 %s2, 4
          %s201 = int_to_ptr.hbm [resolvable:$true] %s200
          %s202 = sshll.u32 [#allocation7], 4
          %s203 = int_to_ptr.vmem [resolvable:$true] %s202
          %205 = dma.hbm_to_vmem [thread:$0]  %s201, 32, %s203, [#allocation6]
        $region20: #{tpu_custom_call.1} parent=11 // pred_fallthru
          _
        // Predicated region
        $region21: #{tpu_custom_call.1} parent=11 // pred_check
          %p206 = pneg %p116
        $region22: #{tpu_custom_call.1} parent=11 // pred_check_branch
          %208 = sbr.rel (%p206) target = $region24
        $region23: #{tpu_custom_call.1} parent=11 // pred_region
          _
        $region24: #{tpu_custom_call.1} parent=11 // pred_fallthru
          _
        // Predicated region
        $region25: #{tpu_custom_call.1} parent=11 // pred_check
          %p209 = pneg %p137
        $region26: #{tpu_custom_call.1} parent=11 // pred_check_branch
          %211 = sbr.rel (%p209) target = $region28
        $region27: #{tpu_custom_call.1} parent=11 // pred_region
          _
        $region28: #{tpu_custom_call.1} parent=11 // pred_fallthru
          _
      $region12: #{tpu_custom_call.1} parent=5 // pred_fallthru
        _
      %p212 = scmp.lt.s32.totalorder %s15, 4
      // Predicated region
      $region29: #{tpu_custom_call.1} parent=5 // pred_check
        %p213 = pneg %p212
      $region30: #{tpu_custom_call.1} parent=5 // pred_check_branch
        %215 = sbr.rel (%p213) target = $region32
      $region31: #{tpu_custom_call.1} parent=5 // pred_region
        // Predicated region
        $region33: #{tpu_custom_call.1} parent=31 // pred_check
          %p216 = pneg %p47
        $region34: #{tpu_custom_call.1} parent=31 // pred_check_branch
          %218 = sbr.rel (%p216) target = $region36
        $region35: #{tpu_custom_call.1} parent=31 // pred_region
          %s219 = sand.u32 %s37, 1
          %s220 = scalar_lea.sflag [#allocation4], %s219
          %s221 = sand.u32 %s37, 1
          %s222 = smul.addr %s221, 128
          %s223 = scalar_lea.vmem [#allocation3], %s222
          %225 = vsyncadd %s220, 0
          %s226 = smul.addr %s22, 32
          %s227 = smul.addr %s226, 4
          %s228 = scalar_lea.hbm %s0, %s227
          %s229 = sshll.u32 %s228, 4
          %s230 = int_to_ptr.hbm [resolvable:$true] %s229
          %s231 = sshll.u32 %s223, 4
          %s232 = int_to_ptr.vmem [resolvable:$true] %s231
          %237 = dma.hbm_to_vmem [thread:$0]  %s230, 2048, %s232, %s220, 64, 64, 4
        $region36: #{tpu_custom_call.1} parent=31 // pred_fallthru
          _
      $region32: #{tpu_custom_call.1} parent=5 // pred_fallthru
        _
      %p238 = scmp.le.s32.totalorder 1, %s15
      %p239 = scmp.lt.s32.totalorder %s15, 5
      %p240 = pnand %p238, %p239
      %p241 = pneg %p240
      // Predicated region
      $region37: #{tpu_custom_call.1} parent=5 // pred_check
        _
      $region38: #{tpu_custom_call.1} parent=5 // pred_check_branch
        %243 = sbr.rel (%p240) target = $region40
      $region39: #{tpu_custom_call.1} parent=5 // pred_region
        %s244 = ssub.s32 %s15, 1
        %s245 = sand.u32 %s40, 1
        %s246 = scalar_lea.sflag [#allocation4], %s245
        %s247 = sand.u32 %s40, 1
        %s248 = smul.addr %s247, 128
        %s249 = scalar_lea.vmem [#allocation3], %s248
        // Predicated region
        $region41: #{tpu_custom_call.1} parent=39 // pred_check
          %p250 = pneg %p53
        $region42: #{tpu_custom_call.1} parent=39 // pred_check_branch
          %252 = sbr.rel (%p250) target = $region44
        $region43: #{tpu_custom_call.1} parent=39 // pred_region
          %254 = dma.done %s246, 2048
        $region44: #{tpu_custom_call.1} parent=39 // pred_fallthru
          _
        // Predicated region
        $region45: #{tpu_custom_call.1} parent=39 // pred_check
          %p255 = pneg %p74
        $region46: #{tpu_custom_call.1} parent=39 // pred_check_branch
          %257 = sbr.rel (%p255) target = $region48
        $region47: #{tpu_custom_call.1} parent=39 // pred_region
          %259 = dma.done [#allocation6], 9216
        $region48: #{tpu_custom_call.1} parent=39 // pred_fallthru
          _
        // Predicated region
        $region49: #{tpu_custom_call.1} parent=39 // pred_check
          %p260 = pneg %p95
        $region50: #{tpu_custom_call.1} parent=39 // pred_check_branch
          %262 = sbr.rel (%p260) target = $region52
        $region51: #{tpu_custom_call.1} parent=39 // pred_region
          %264 = dma.done [#allocation6], 32
        $region52: #{tpu_custom_call.1} parent=39 // pred_fallthru
          _
        %s265 = sand.u32 %s40, 1
        %s266 = scalar_lea.sflag [#allocation4], %s265
        %s267 = sand.u32 %s40, 1
        %s268 = smul.addr %s267, 128
        %s269 = scalar_lea.vmem [#allocation3], %s268
        %p270 = pneg %p53
        %p271 = pneg %p50
        %p272 = pneg %p74
        %p273 = pneg %p71
        %p274 = pneg %p95
        %p275 = pneg %p92
        %p276 = pneg %p116
        %p277 = pneg %p113
        %p278 = pneg %p137
        %p279 = pneg %p134
        %p280 = pneg %p165
        %p281 = pneg %p162
        %p282 = scmp.lt.s32.totalorder %s24, 1
        %s283 = scalar_select %p282, %s24, 1
        %p284 = scmp.lt.s32.totalorder %s25, 1
        %s285 = scalar_select %p284, %s25, 1
        %s286 = smul.addr %s283, 2
        %s287 = sadd.s32 %s285, %s286
        %s288 = smul.addr %s287, 8
        %s289 = scalar_lea.vmem %s5, %s288
        %p290 = scmp.lt.s32.totalorder %s24, 1
        %s291 = scalar_select %p290, %s24, 1
        %p292 = scmp.lt.s32.totalorder %s25, 1
        %s293 = scalar_select %p292, %s25, 1
        %s294 = smul.addr %s291, 2
        %s295 = sadd.s32 %s293, %s294
        %s296 = smul.addr %s295, 8
        %s297 = scalar_lea.vmem %s5, %s296
        %s299 = smul.u32 %s25, 8
        %vm300 = vcmask 516096
        %vm301 = vsmask.f32 256
        %vm302 = vmand %vm300, %vm301
        %v303 = vld [vmem:[#allocation2] sm:$0x1]
        %v304 = vsel %vm302, 0, %v303
        %305 = vst [vmem:[#allocation2] sm:$0x1] %v304
        %v306 = vld [vmem:[#allocation2 + $0xc] sm:$0x1]
        %v307 = vsel %vm302, 0, %v306
        %308 = vst [vmem:[#allocation2 + $0xc] sm:$0x1] %v307
        %v309 = vld [vmem:[#allocation2 + $0x18] sm:$0x1]
        %v310 = vsel %vm302, 0, %v309
        %311 = vst [vmem:[#allocation2 + $0x18] sm:$0x1] %v310
        %v312 = vld [vmem:[#allocation2 + $0x24] sm:$0x1]
        %v313 = vsel %vm302, 0, %v312
        %314 = vst [vmem:[#allocation2 + $0x24] sm:$0x1] %v313
        %v315 = vld [vmem:[#allocation2 + $0x30] sm:$0x1]
        %v316 = vsel %vm302, 0, %v315
        %317 = vst [vmem:[#allocation2 + $0x30] sm:$0x1] %v316
        %v318 = vld [vmem:[#allocation2 + $0x3c] sm:$0x1]
        %v319 = vsel %vm302, 0, %v318
        %320 = vst [vmem:[#allocation2 + $0x3c] sm:$0x1] %v319
        %v321 = vld [vmem:[#allocation2 + $0x48] sm:$0x1]
        %v322 = vsel %vm302, 0, %v321
        %323 = vst [vmem:[#allocation2 + $0x48] sm:$0x1] %v322
        %v324 = vld [vmem:[#allocation2 + $0x54] sm:$0x1]
        %v325 = vsel %vm302, 0, %v324
        %326 = vst [vmem:[#allocation2 + $0x54] sm:$0x1] %v325
        %v327 = vld [vmem:[#allocation2 + $0x60] sm:$0x1]
        %v328 = vsel %vm302, 0, %v327
        %329 = vst [vmem:[#allocation2 + $0x60] sm:$0x1] %v328
        %v330 = vld [vmem:[#allocation2 + $0x6c] sm:$0x1]
        %v331 = vsel %vm302, 0, %v330
        %332 = vst [vmem:[#allocation2 + $0x6c] sm:$0x1] %v331
        %vm333 = vsmask.f32 7938
        %vm334 = vmand %vm300, %vm333
        %v335 = vld [vmem:[#allocation2 + $0x8] sm:$0x1]
        %v336 = vsel %vm334, 0, %v335
        %337 = vst [vmem:[#allocation2 + $0x8] sm:$0x1] %v336
        %v338 = vld [vmem:[#allocation2 + $0x14] sm:$0x1]
        %v339 = vsel %vm334, 0, %v338
        %340 = vst [vmem:[#allocation2 + $0x14] sm:$0x1] %v339
        %v341 = vld [vmem:[#allocation2 + $0x20] sm:$0x1]
        %v342 = vsel %vm334, 0, %v341
        %343 = vst [vmem:[#allocation2 + $0x20] sm:$0x1] %v342
        %v344 = vld [vmem:[#allocation2 + $0x2c] sm:$0x1]
        %v345 = vsel %vm334, 0, %v344
        %346 = vst [vmem:[#allocation2 + $0x2c] sm:$0x1] %v345
        %v347 = vld [vmem:[#allocation2 + $0x38] sm:$0x1]
        %v348 = vsel %vm334, 0, %v347
        %349 = vst [vmem:[#allocation2 + $0x38] sm:$0x1] %v348
        %v350 = vld [vmem:[#allocation2 + $0x44] sm:$0x1]
        %v351 = vsel %vm334, 0, %v350
        %352 = vst [vmem:[#allocation2 + $0x44] sm:$0x1] %v351
        %v353 = vld [vmem:[#allocation2 + $0x50] sm:$0x1]
        %v354 = vsel %vm334, 0, %v353
        %355 = vst [vmem:[#allocation2 + $0x50] sm:$0x1] %v354
        %v356 = vld [vmem:[#allocation2 + $0x5c] sm:$0x1]
        %v357 = vsel %vm334, 0, %v356
        %358 = vst [vmem:[#allocation2 + $0x5c] sm:$0x1] %v357
        %v359 = vld [vmem:[#allocation2 + $0x68] sm:$0x1]
        %v360 = vsel %vm334, 0, %v359
        %361 = vst [vmem:[#allocation2 + $0x68] sm:$0x1] %v360
        %v362 = vld [vmem:[#allocation2 + $0x74] sm:$0x1]
        %v363 = vsel %vm334, 0, %v362
        %364 = vst [vmem:[#allocation2 + $0x74] sm:$0x1] %v363
        %s365 = smul.u32 %s299, 2
        %s366 = smul.addr %s365, 4
        %s367 = scalar_lea.vmem %s249, %s366 [#allocation3]
        %v368 = vld [vmem:[%s367] sm:$0xf]
        %v369 = vld [vmem:[%s367 + $0x4] sm:$0xf]
        %v370 = vld [vmem:[%s367 + $0x8] sm:$0xf]
        %v371 = vld [vmem:[%s367 + $0xc] sm:$0xf]
        %v372 = vld [vmem:[%s367 + $0x10] sm:$0xf]
        %v373 = vld [vmem:[%s367 + $0x14] sm:$0xf]
        %v374 = vld [vmem:[%s367 + $0x18] sm:$0xf]
        %v375 = vld [vmem:[%s367 + $0x1c] sm:$0xf]
        %v376 = vld [vmem:[%s367 + $0x20] sm:$0xf]
        %v377 = vld [vmem:[%s367 + $0x24] sm:$0xf]
        %v378 = vld [vmem:[%s367 + $0x28] sm:$0xf]
        %v379 = vld [vmem:[%s367 + $0x2c] sm:$0xf]
        %v380 = vld [vmem:[%s367 + $0x30] sm:$0xf]
        %v381 = vld [vmem:[%s367 + $0x34] sm:$0xf]
        %v382 = vld [vmem:[%s367 + $0x38] sm:$0xf]
        %v383 = vld [vmem:[%s367 + $0x3c] sm:$0xf]
        %vm384 = vsmask.f32 4368
        %vm385 = vmor %vm301, %vm384
        %v387 = vshrl.u32 %v368, 16
        %v389 = vrot.slane %v387, 7
        %v390 = vshll.u32 %v368, 16
        %v392 = vor.u32 %v389, %v390
        %v393 = vrot.slane %v389, 4
        %v395 = vshrl.u32 %v369, 16
        %v397 = vrot.slane %v395, 7
        %v398 = vshll.u32 %v369, 16
        %v400 = vor.u32 %v397, %v398
        %v401 = vsel %vm385, %v393, %v400
        %v402 = vrot.slane %v397, 4
        %v404 = vshrl.u32 %v370, 16
        %v406 = vrot.slane %v404, 7
        %v407 = vshll.u32 %v370, 16
        %v409 = vor.u32 %v406, %v407
        %v410 = vrot.slane %v406, 4
        %v412 = vshrl.u32 %v371, 16
        %v414 = vrot.slane %v412, 7
        %v415 = vshll.u32 %v371, 16
        %v417 = vor.u32 %v414, %v415
        %v418 = vsel %vm385, %v410, %v417
        %v419 = vrot.slane %v414, 4
        %v421 = vshrl.u32 %v372, 16
        %v423 = vrot.slane %v421, 7
        %v424 = vshll.u32 %v372, 16
        %v426 = vor.u32 %v423, %v424
        %v427 = vrot.slane %v423, 4
        %v429 = vshrl.u32 %v373, 16
        %v431 = vrot.slane %v429, 7
        %v432 = vshll.u32 %v373, 16
        %v434 = vor.u32 %v431, %v432
        %v435 = vsel %vm385, %v427, %v434
        %v436 = vrot.slane %v431, 4
        %v438 = vshrl.u32 %v374, 16
        %v440 = vrot.slane %v438, 7
        %v441 = vshll.u32 %v374, 16
        %v443 = vor.u32 %v440, %v441
        %v444 = vrot.slane %v440, 4
        %v446 = vshrl.u32 %v375, 16
        %v448 = vrot.slane %v446, 7
        %v449 = vshll.u32 %v375, 16
        %v451 = vor.u32 %v448, %v449
        %v452 = vsel %vm385, %v444, %v451
        %v453 = vrot.slane %v448, 4
        %v455 = vshrl.u32 %v376, 16
        %v457 = vrot.slane %v455, 7
        %v458 = vshll.u32 %v376, 16
        %v460 = vor.u32 %v457, %v458
        %v461 = vrot.slane %v457, 4
        %v463 = vshrl.u32 %v377, 16
        %v465 = vrot.slane %v463, 7
        %v466 = vshll.u32 %v377, 16
        %v468 = vor.u32 %v465, %v466
        %v469 = vsel %vm385, %v461, %v468
        %v470 = vrot.slane %v465, 4
        %v472 = vshrl.u32 %v378, 16
        %v474 = vrot.slane %v472, 7
        %v475 = vshll.u32 %v378, 16
        %v477 = vor.u32 %v474, %v475
        %v478 = vrot.slane %v474, 4
        %v480 = vshrl.u32 %v379, 16
        %v482 = vrot.slane %v480, 7
        %v483 = vshll.u32 %v379, 16
        %v485 = vor.u32 %v482, %v483
        %v486 = vsel %vm385, %v478, %v485
        %v487 = vrot.slane %v482, 4
        %v489 = vshrl.u32 %v380, 16
        %v491 = vrot.slane %v489, 7
        %v492 = vshll.u32 %v380, 16
        %v494 = vor.u32 %v491, %v492
        %v495 = vrot.slane %v491, 4
        %v497 = vshrl.u32 %v381, 16
        %v499 = vrot.slane %v497, 7
        %v500 = vshll.u32 %v381, 16
        %v502 = vor.u32 %v499, %v500
        %v503 = vsel %vm385, %v495, %v502
        %v504 = vrot.slane %v499, 4
        %v506 = vshrl.u32 %v382, 16
        %v508 = vrot.slane %v506, 7
        %v509 = vshll.u32 %v382, 16
        %v511 = vor.u32 %v508, %v509
        %v512 = vrot.slane %v508, 4
        %v514 = vshrl.u32 %v383, 16
        %v516 = vrot.slane %v514, 7
        %v517 = vshll.u32 %v383, 16
        %v519 = vor.u32 %v516, %v517
        %v520 = vsel %vm385, %v512, %v519
        %v521 = vrot.slane %v516, 4
        %s546 = scalar_lea.vmem [#allocation2], 12
        %vm547 = vcmask 519168
        %vm548 = vmand %vm547, %vm333
        %v549 = vld [vmem:[%s546] sm:$0xf]
        %v550 = vsel %vm548, %v392, %v549
        %551 = vst [vmem:[%s546] sm:$0xf] %v550
        %vm552 = vcmask 519168
        %553 = vst.msk [vmem:[%s546 + $0x4] sm:$0xf] %vm552, %v401
        %v554 = vld [vmem:[%s546 + $0x8] sm:$0x1]
        %v555 = vsel %vm302, %v402, %v554
        %556 = vst [vmem:[%s546 + $0x8] sm:$0x1] %v555
        %v557 = vld [vmem:[%s546 + $0xc] sm:$0xf]
        %v558 = vsel %vm548, %v409, %v557
        %559 = vst [vmem:[%s546 + $0xc] sm:$0xf] %v558
        %560 = vst.msk [vmem:[%s546 + $0x10] sm:$0xf] %vm552, %v418
        %v561 = vld [vmem:[%s546 + $0x14] sm:$0x1]
        %v562 = vsel %vm302, %v419, %v561
        %563 = vst [vmem:[%s546 + $0x14] sm:$0x1] %v562
        %v564 = vld [vmem:[%s546 + $0x18] sm:$0xf]
        %v565 = vsel %vm548, %v426, %v564
        %566 = vst [vmem:[%s546 + $0x18] sm:$0xf] %v565
        %567 = vst.msk [vmem:[%s546 + $0x1c] sm:$0xf] %vm552, %v435
        %v568 = vld [vmem:[%s546 + $0x20] sm:$0x1]
        %v569 = vsel %vm302, %v436, %v568
        %570 = vst [vmem:[%s546 + $0x20] sm:$0x1] %v569
        %v571 = vld [vmem:[%s546 + $0x24] sm:$0xf]
        %v572 = vsel %vm548, %v443, %v571
        %573 = vst [vmem:[%s546 + $0x24] sm:$0xf] %v572
        %574 = vst.msk [vmem:[%s546 + $0x28] sm:$0xf] %vm552, %v452
        %v575 = vld [vmem:[%s546 + $0x2c] sm:$0x1]
        %v576 = vsel %vm302, %v453, %v575
        %577 = vst [vmem:[%s546 + $0x2c] sm:$0x1] %v576
        %v578 = vld [vmem:[%s546 + $0x30] sm:$0xf]
        %v579 = vsel %vm548, %v460, %v578
        %580 = vst [vmem:[%s546 + $0x30] sm:$0xf] %v579
        %581 = vst.msk [vmem:[%s546 + $0x34] sm:$0xf] %vm552, %v469
        %v582 = vld [vmem:[%s546 + $0x38] sm:$0x1]
        %v583 = vsel %vm302, %v470, %v582
        %584 = vst [vmem:[%s546 + $0x38] sm:$0x1] %v583
        %v585 = vld [vmem:[%s546 + $0x3c] sm:$0xf]
        %v586 = vsel %vm548, %v477, %v585
        %587 = vst [vmem:[%s546 + $0x3c] sm:$0xf] %v586
        %588 = vst.msk [vmem:[%s546 + $0x40] sm:$0xf] %vm552, %v486
        %v589 = vld [vmem:[%s546 + $0x44] sm:$0x1]
        %v590 = vsel %vm302, %v487, %v589
        %591 = vst [vmem:[%s546 + $0x44] sm:$0x1] %v590
        %v592 = vld [vmem:[%s546 + $0x48] sm:$0xf]
        %v593 = vsel %vm548, %v494, %v592
        %594 = vst [vmem:[%s546 + $0x48] sm:$0xf] %v593
        %595 = vst.msk [vmem:[%s546 + $0x4c] sm:$0xf] %vm552, %v503
        %v596 = vld [vmem:[%s546 + $0x50] sm:$0x1]
        %v597 = vsel %vm302, %v504, %v596
        %598 = vst [vmem:[%s546 + $0x50] sm:$0x1] %v597
        %v599 = vld [vmem:[%s546 + $0x54] sm:$0xf]
        %v600 = vsel %vm548, %v511, %v599
        %601 = vst [vmem:[%s546 + $0x54] sm:$0xf] %v600
        %602 = vst.msk [vmem:[%s546 + $0x58] sm:$0xf] %vm552, %v520
        %v603 = vld [vmem:[%s546 + $0x5c] sm:$0x1]
        %v604 = vsel %vm302, %v521, %v603
        %605 = vst [vmem:[%s546 + $0x5c] sm:$0x1] %v604
        %s606 = ssub.s32 %s299, 1
        %p607 = scmp.gt.s32.totalorder %s606, 0
        %s608 = scalar_select %p607, %s606, 0
        %s609 = smul.u32 %s608, 2
        %s610 = smul.addr %s609, 4
        %s611 = scalar_lea.vmem %s249, %s610 [#allocation3]
        %v612 = vld [vmem:[%s611] sm:$0xf]
        %v613 = vld [vmem:[%s611 + $0x4] sm:$0xf]
        %p614 = scmp.gt.s32.totalorder %s25, 0
        %s615 = scalar_select %p614, 1, 0
        %v616 = vstv %s615
        %vm617 = vcmp.eq.s32.totalorder %v616, 1
        %v618 = vsel %vm617, %v612, 0
        %v619 = vsel %vm617, %v613, 0
        %v621 = vshrl.u32 %v618, 16
        %v623 = vrot.slane %v621, 7
        %v624 = vshll.u32 %v618, 16
        %v626 = vor.u32 %v623, %v624
        %v627 = vrot.slane %v623, 4
        %v629 = vshrl.u32 %v619, 16
        %v631 = vrot.slane %v629, 7
        %v632 = vshll.u32 %v619, 16
        %v634 = vor.u32 %v631, %v632
        %v635 = vsel %vm385, %v627, %v634
        %v636 = vrot.slane %v631, 4
        %v640 = vld [vmem:[#allocation2] sm:$0xf]
        %v641 = vsel %vm548, %v626, %v640
        %642 = vst [vmem:[#allocation2] sm:$0xf] %v641
        %643 = vst.msk [vmem:[#allocation2 + $0x4] sm:$0xf] %vm552, %v635
        %v644 = vld [vmem:[#allocation2 + $0x8] sm:$0x1]
        %v645 = vsel %vm302, %v636, %v644
        %646 = vst [vmem:[#allocation2 + $0x8] sm:$0x1] %v645
        %s647 = sadd.s32 %s299, 8
        %p648 = scmp.lt.s32.totalorder %s647, 15
        %s649 = scalar_select %p648, %s647, 15
        %s650 = smul.u32 %s649, 2
        %s651 = smul.addr %s650, 4
        %s652 = scalar_lea.vmem %s249, %s651 [#allocation3]
        %v653 = vld [vmem:[%s652] sm:$0xf]
        %v654 = vld [vmem:[%s652 + $0x4] sm:$0xf]
        %p655 = scmp.lt.s32.totalorder %s25, 1
        %s656 = scalar_select %p655, 1, 0
        %v657 = vstv %s656
        %vm658 = vcmp.eq.s32.totalorder %v657, 1
        %v659 = vsel %vm658, %v653, 0
        %v660 = vsel %vm658, %v654, 0
        %v662 = vshrl.u32 %v659, 16
        %v664 = vrot.slane %v662, 7
        %v665 = vshll.u32 %v659, 16
        %v667 = vor.u32 %v664, %v665
        %v668 = vrot.slane %v664, 4
        %v670 = vshrl.u32 %v660, 16
        %v672 = vrot.slane %v670, 7
        %v673 = vshll.u32 %v660, 16
        %v675 = vor.u32 %v672, %v673
        %v676 = vsel %vm385, %v668, %v675
        %v677 = vrot.slane %v672, 4
        %s681 = scalar_lea.vmem [#allocation2], 108
        %v682 = vld [vmem:[%s681] sm:$0xf]
        %v683 = vsel %vm548, %v667, %v682
        %684 = vst [vmem:[%s681] sm:$0xf] %v683
        %685 = vst.msk [vmem:[%s681 + $0x4] sm:$0xf] %vm552, %v676
        %v686 = vld [vmem:[%s681 + $0x8] sm:$0x1]
        %v687 = vsel %vm302, %v677, %v686
        %688 = vst [vmem:[%s681 + $0x8] sm:$0x1] %v687
        %v689 = vld [vmem:[#allocation2] sm:$0xf]
        %v690 = vld [vmem:[#allocation2 + $0x4] sm:$0xf]
        %v691 = vld [vmem:[#allocation2 + $0x8] sm:$0x1]
        %v692 = vld [vmem:[#allocation2 + $0xc] sm:$0xf]
        %v693 = vld [vmem:[#allocation2 + $0x10] sm:$0xf]
        %v694 = vld [vmem:[#allocation2 + $0x14] sm:$0x1]
        %v695 = vld [vmem:[#allocation2 + $0x18] sm:$0xf]
        %v696 = vld [vmem:[#allocation2 + $0x1c] sm:$0xf]
        %v697 = vld [vmem:[#allocation2 + $0x20] sm:$0x1]
        %v698 = vld [vmem:[#allocation2 + $0x24] sm:$0xf]
        %v699 = vld [vmem:[#allocation2 + $0x28] sm:$0xf]
        %v700 = vld [vmem:[#allocation2 + $0x2c] sm:$0x1]
        %v701 = vld [vmem:[#allocation2 + $0x30] sm:$0xf]
        %v702 = vld [vmem:[#allocation2 + $0x34] sm:$0xf]
        %v703 = vld [vmem:[#allocation2 + $0x38] sm:$0x1]
        %v704 = vld [vmem:[#allocation2 + $0x3c] sm:$0xf]
        %v705 = vld [vmem:[#allocation2 + $0x40] sm:$0xf]
        %v706 = vld [vmem:[#allocation2 + $0x44] sm:$0x1]
        %v707 = vld [vmem:[#allocation2 + $0x48] sm:$0xf]
        %v708 = vld [vmem:[#allocation2 + $0x4c] sm:$0xf]
        %v709 = vld [vmem:[#allocation2 + $0x50] sm:$0x1]
        %v710 = vld [vmem:[#allocation2 + $0x54] sm:$0xf]
        %v711 = vld [vmem:[#allocation2 + $0x58] sm:$0xf]
        %v712 = vld [vmem:[#allocation2 + $0x5c] sm:$0x1]
        %v729 = vunpack.c.l.b16 %v689
        %v730 = vunpack.c.l.b16 %v690
        %v731 = vunpack.c.l.b16 %v692
        %v732 = vunpack.c.l.b16 %v693
        %v733 = vunpack.c.l.b16 %v695
        %v734 = vunpack.c.l.b16 %v696
        %v735 = vunpack.c.l.b16 %v698
        %v736 = vunpack.c.l.b16 %v699
        %v737 = vunpack.c.l.b16 %v701
        %v738 = vunpack.c.l.b16 %v702
        %v739 = vunpack.c.l.b16 %v704
        %v740 = vunpack.c.l.b16 %v705
        %v741 = vunpack.c.l.b16 %v707
        %v742 = vunpack.c.l.b16 %v708
        %v743 = vunpack.c.l.b16 %v710
        %v744 = vunpack.c.l.b16 %v711
        %v745 = vpack.c.b16 %v730, %v729
        %v746 = vpack.c.b16 %v732, %v731
        %v747 = vpack.c.b16 %v734, %v733
        %v748 = vpack.c.b16 %v736, %v735
        %v749 = vpack.c.b16 %v738, %v737
        %v750 = vpack.c.b16 %v740, %v739
        %v751 = vpack.c.b16 %v742, %v741
        %v752 = vpack.c.b16 %v744, %v743
        %v761 = vunpack.c.l.b16 %v691
        %v762 = vunpack.c.l.b16 %v694
        %v763 = vunpack.c.l.b16 %v697
        %v764 = vunpack.c.l.b16 %v700
        %v765 = vunpack.c.l.b16 %v703
        %v766 = vunpack.c.l.b16 %v706
        %v767 = vunpack.c.l.b16 %v709
        %v768 = vunpack.c.l.b16 %v712
        %v769 = vpack.c.b16 %v761, %v761
        %v770 = vpack.c.b16 %v762, %v762
        %v771 = vpack.c.b16 %v763, %v763
        %v772 = vpack.c.b16 %v764, %v764
        %v773 = vpack.c.b16 %v765, %v765
        %v774 = vpack.c.b16 %v766, %v766
        %v775 = vpack.c.b16 %v767, %v767
        %v776 = vpack.c.b16 %v768, %v768
        %vm777 = vsmask.f32 7424
        %v779 = vshrl.u32 %v745, 16
        %v781 = vshll.u32 %v745, 16
        %v783 = vrot.slane %v781, 1
        %v784 = vor.u32 %v779, %v783
        %v786 = vshll.u32 %v769, 16
        %v788 = vrot.slane %v786, 1
        %v789 = vsel %vm777, %v784, %v788
        %v791 = vshrl.u32 %v746, 16
        %v793 = vshll.u32 %v746, 16
        %v795 = vrot.slane %v793, 1
        %v796 = vor.u32 %v791, %v795
        %v798 = vshll.u32 %v770, 16
        %v800 = vrot.slane %v798, 1
        %v801 = vsel %vm777, %v796, %v800
        %v803 = vshrl.u32 %v747, 16
        %v805 = vshll.u32 %v747, 16
        %v807 = vrot.slane %v805, 1
        %v808 = vor.u32 %v803, %v807
        %v810 = vshll.u32 %v771, 16
        %v812 = vrot.slane %v810, 1
        %v813 = vsel %vm777, %v808, %v812
        %v815 = vshrl.u32 %v748, 16
        %v817 = vshll.u32 %v748, 16
        %v819 = vrot.slane %v817, 1
        %v820 = vor.u32 %v815, %v819
        %v822 = vshll.u32 %v772, 16
        %v824 = vrot.slane %v822, 1
        %v825 = vsel %vm777, %v820, %v824
        %v827 = vshrl.u32 %v749, 16
        %v829 = vshll.u32 %v749, 16
        %v831 = vrot.slane %v829, 1
        %v832 = vor.u32 %v827, %v831
        %v834 = vshll.u32 %v773, 16
        %v836 = vrot.slane %v834, 1
        %v837 = vsel %vm777, %v832, %v836
        %v839 = vshrl.u32 %v750, 16
        %v841 = vshll.u32 %v750, 16
        %v843 = vrot.slane %v841, 1
        %v844 = vor.u32 %v839, %v843
        %v846 = vshll.u32 %v774, 16
        %v848 = vrot.slane %v846, 1
        %v849 = vsel %vm777, %v844, %v848
        %v851 = vshrl.u32 %v751, 16
        %v853 = vshll.u32 %v751, 16
        %v855 = vrot.slane %v853, 1
        %v856 = vor.u32 %v851, %v855
        %v858 = vshll.u32 %v775, 16
        %v860 = vrot.slane %v858, 1
        %v861 = vsel %vm777, %v856, %v860
        %v863 = vshrl.u32 %v752, 16
        %v865 = vshll.u32 %v752, 16
        %v867 = vrot.slane %v865, 1
        %v868 = vor.u32 %v863, %v867
        %v870 = vshll.u32 %v776, 16
        %v872 = vrot.slane %v870, 1
        %v873 = vsel %vm777, %v868, %v872
        %874 = vrot.lane.b32.xlu0 %v789, 64
        %v875 = vpop.permute.xlu0 %874
        %876 = vrot.lane.b32.xlu0 %v801, 64
        %v877 = vpop.permute.xlu0 %876
        %878 = vrot.lane.b32.xlu0 %v813, 64
        %v879 = vpop.permute.xlu0 %878
        %880 = vrot.lane.b32.xlu0 %v825, 64
        %v881 = vpop.permute.xlu0 %880
        %882 = vrot.lane.b32.xlu0 %v837, 64
        %v883 = vpop.permute.xlu0 %882
        %884 = vrot.lane.b32.xlu0 %v849, 64
        %v885 = vpop.permute.xlu0 %884
        %886 = vrot.lane.b32.xlu0 %v861, 64
        %v887 = vpop.permute.xlu0 %886
        %888 = vrot.lane.b32.xlu0 %v873, 64
        %v889 = vpop.permute.xlu0 %888
        %vm890 = vcmask 1046528
        %v891 = vrot.slane %v745, 1
        %v892 = vrot.slane %v769, 1
        %v893 = vsel %vm890, %v891, %v892
        %v894 = vrot.slane %v746, 1
        %v895 = vrot.slane %v770, 1
        %v896 = vsel %vm890, %v894, %v895
        %v897 = vrot.slane %v747, 1
        %v898 = vrot.slane %v771, 1
        %v899 = vsel %vm890, %v897, %v898
        %v900 = vrot.slane %v748, 1
        %v901 = vrot.slane %v772, 1
        %v902 = vsel %vm890, %v900, %v901
        %v903 = vrot.slane %v749, 1
        %v904 = vrot.slane %v773, 1
        %v905 = vsel %vm890, %v903, %v904
        %v906 = vrot.slane %v750, 1
        %v907 = vrot.slane %v774, 1
        %v908 = vsel %vm890, %v906, %v907
        %v909 = vrot.slane %v751, 1
        %v910 = vrot.slane %v775, 1
        %v911 = vsel %vm890, %v909, %v910
        %v912 = vrot.slane %v752, 1
        %v913 = vrot.slane %v776, 1
        %v914 = vsel %vm890, %v912, %v913
        %vm915 = vcmask 523264
        %v917 = vsel %vm915, %v745, %v875
        %v920 = vsel %vm915, %v746, %v877
        %v923 = vsel %vm915, %v747, %v879
        %v926 = vsel %vm915, %v748, %v881
        %v929 = vsel %vm915, %v749, %v883
        %v932 = vsel %vm915, %v750, %v885
        %v935 = vsel %vm915, %v751, %v887
        %v938 = vsel %vm915, %v752, %v889
        %v940 = vld [vmem:[#allocation5] sm:$0xff]
        %v941 = vld [vmem:[#allocation5 + $0x8] sm:$0xff]
        %v942 = vld [vmem:[#allocation5 + $0x10] sm:$0xff]
        %v943 = vld [vmem:[#allocation5 + $0x18] sm:$0xff]
        %v944 = vld [vmem:[#allocation5 + $0x20] sm:$0xff]
        %v945 = vld [vmem:[#allocation5 + $0x28] sm:$0xff]
        %v946 = vld [vmem:[#allocation5 + $0x30] sm:$0xff]
        %v947 = vld [vmem:[#allocation5 + $0x38] sm:$0xff]
        %v948 = vld [vmem:[#allocation5 + $0x40] sm:$0xff]
        %v949 = vld [vmem:[#allocation5 + $0x48] sm:$0xff]
        %v950 = vld [vmem:[#allocation5 + $0x50] sm:$0xff]
        %v951 = vld [vmem:[#allocation5 + $0x58] sm:$0xff]
        %v952 = vld [vmem:[#allocation5 + $0x60] sm:$0xff]
        %v953 = vld [vmem:[#allocation5 + $0x68] sm:$0xff]
        %v954 = vld [vmem:[#allocation5 + $0x70] sm:$0xff]
        %v955 = vld [vmem:[#allocation5 + $0x78] sm:$0xff]
        %v956 = vld [vmem:[#allocation5 + $0x80] sm:$0xff]
        %v957 = vld [vmem:[#allocation5 + $0x88] sm:$0xff]
        %v958 = vld [vmem:[#allocation5 + $0x90] sm:$0xff]
        %v959 = vld [vmem:[#allocation5 + $0x98] sm:$0xff]
        %v960 = vld [vmem:[#allocation5 + $0xa0] sm:$0xff]
        %v961 = vld [vmem:[#allocation5 + $0xa8] sm:$0xff]
        %v962 = vld [vmem:[#allocation5 + $0xb0] sm:$0xff]
        %v963 = vld [vmem:[#allocation5 + $0xb8] sm:$0xff]
        %v964 = vld [vmem:[%s546] sm:$0xf]
        %v965 = vld [vmem:[%s546 + $0x4] sm:$0xf]
        %v966 = vld [vmem:[%s546 + $0x8] sm:$0x1]
        %v967 = vld [vmem:[%s546 + $0xc] sm:$0xf]
        %v968 = vld [vmem:[%s546 + $0x10] sm:$0xf]
        %v969 = vld [vmem:[%s546 + $0x14] sm:$0x1]
        %v970 = vld [vmem:[%s546 + $0x18] sm:$0xf]
        %v971 = vld [vmem:[%s546 + $0x1c] sm:$0xf]
        %v972 = vld [vmem:[%s546 + $0x20] sm:$0x1]
        %v973 = vld [vmem:[%s546 + $0x24] sm:$0xf]
        %v974 = vld [vmem:[%s546 + $0x28] sm:$0xf]
        %v975 = vld [vmem:[%s546 + $0x2c] sm:$0x1]
        %v976 = vld [vmem:[%s546 + $0x30] sm:$0xf]
        %v977 = vld [vmem:[%s546 + $0x34] sm:$0xf]
        %v978 = vld [vmem:[%s546 + $0x38] sm:$0x1]
        %v979 = vld [vmem:[%s546 + $0x3c] sm:$0xf]
        %v980 = vld [vmem:[%s546 + $0x40] sm:$0xf]
        %v981 = vld [vmem:[%s546 + $0x44] sm:$0x1]
        %v982 = vld [vmem:[%s546 + $0x48] sm:$0xf]
        %v983 = vld [vmem:[%s546 + $0x4c] sm:$0xf]
        %v984 = vld [vmem:[%s546 + $0x50] sm:$0x1]
        %v985 = vld [vmem:[%s546 + $0x54] sm:$0xf]
        %v986 = vld [vmem:[%s546 + $0x58] sm:$0xf]
        %v987 = vld [vmem:[%s546 + $0x5c] sm:$0x1]
        %v1004 = vunpack.c.l.b16 %v964
        %v1005 = vunpack.c.l.b16 %v965
        %v1006 = vunpack.c.l.b16 %v967
        %v1007 = vunpack.c.l.b16 %v968
        %v1008 = vunpack.c.l.b16 %v970
        %v1009 = vunpack.c.l.b16 %v971
        %v1010 = vunpack.c.l.b16 %v973
        %v1011 = vunpack.c.l.b16 %v974
        %v1012 = vunpack.c.l.b16 %v976
        %v1013 = vunpack.c.l.b16 %v977
        %v1014 = vunpack.c.l.b16 %v979
        %v1015 = vunpack.c.l.b16 %v980
        %v1016 = vunpack.c.l.b16 %v982
        %v1017 = vunpack.c.l.b16 %v983
        %v1018 = vunpack.c.l.b16 %v985
        %v1019 = vunpack.c.l.b16 %v986
        %v1020 = vpack.c.b16 %v1005, %v1004
        %v1021 = vpack.c.b16 %v1007, %v1006
        %v1022 = vpack.c.b16 %v1009, %v1008
        %v1023 = vpack.c.b16 %v1011, %v1010
        %v1024 = vpack.c.b16 %v1013, %v1012
        %v1025 = vpack.c.b16 %v1015, %v1014
        %v1026 = vpack.c.b16 %v1017, %v1016
        %v1027 = vpack.c.b16 %v1019, %v1018
        %v1036 = vunpack.c.l.b16 %v966
        %v1037 = vunpack.c.l.b16 %v969
        %v1038 = vunpack.c.l.b16 %v972
        %v1039 = vunpack.c.l.b16 %v975
        %v1040 = vunpack.c.l.b16 %v978
        %v1041 = vunpack.c.l.b16 %v981
        %v1042 = vunpack.c.l.b16 %v984
        %v1043 = vunpack.c.l.b16 %v987
        %v1044 = vpack.c.b16 %v1036, %v1036
        %v1045 = vpack.c.b16 %v1037, %v1037
        %v1046 = vpack.c.b16 %v1038, %v1038
        %v1047 = vpack.c.b16 %v1039, %v1039
        %v1048 = vpack.c.b16 %v1040, %v1040
        %v1049 = vpack.c.b16 %v1041, %v1041
        %v1050 = vpack.c.b16 %v1042, %v1042
        %v1051 = vpack.c.b16 %v1043, %v1043
        %v1053 = vshrl.u32 %v1020, 16
        %v1055 = vshll.u32 %v1020, 16
        %v1057 = vrot.slane %v1055, 1
        %v1058 = vor.u32 %v1053, %v1057
        %v1060 = vshll.u32 %v1044, 16
        %v1062 = vrot.slane %v1060, 1
        %v1063 = vsel %vm777, %v1058, %v1062
        %v1065 = vshrl.u32 %v1021, 16
        %v1067 = vshll.u32 %v1021, 16
        %v1069 = vrot.slane %v1067, 1
        %v1070 = vor.u32 %v1065, %v1069
        %v1072 = vshll.u32 %v1045, 16
        %v1074 = vrot.slane %v1072, 1
        %v1075 = vsel %vm777, %v1070, %v1074
        %v1077 = vshrl.u32 %v1022, 16
        %v1079 = vshll.u32 %v1022, 16
        %v1081 = vrot.slane %v1079, 1
        %v1082 = vor.u32 %v1077, %v1081
        %v1084 = vshll.u32 %v1046, 16
        %v1086 = vrot.slane %v1084, 1
        %v1087 = vsel %vm777, %v1082, %v1086
        %v1089 = vshrl.u32 %v1023, 16
        %v1091 = vshll.u32 %v1023, 16
        %v1093 = vrot.slane %v1091, 1
        %v1094 = vor.u32 %v1089, %v1093
        %v1096 = vshll.u32 %v1047, 16
        %v1098 = vrot.slane %v1096, 1
        %v1099 = vsel %vm777, %v1094, %v1098
        %v1101 = vshrl.u32 %v1024, 16
        %v1103 = vshll.u32 %v1024, 16
        %v1105 = vrot.slane %v1103, 1
        %v1106 = vor.u32 %v1101, %v1105
        %v1108 = vshll.u32 %v1048, 16
        %v1110 = vrot.slane %v1108, 1
        %v1111 = vsel %vm777, %v1106, %v1110
        %v1113 = vshrl.u32 %v1025, 16
        %v1115 = vshll.u32 %v1025, 16
        %v1117 = vrot.slane %v1115, 1
        %v1118 = vor.u32 %v1113, %v1117
        %v1120 = vshll.u32 %v1049, 16
        %v1122 = vrot.slane %v1120, 1
        %v1123 = vsel %vm777, %v1118, %v1122
        %v1125 = vshrl.u32 %v1026, 16
        %v1127 = vshll.u32 %v1026, 16
        %v1129 = vrot.slane %v1127, 1
        %v1130 = vor.u32 %v1125, %v1129
        %v1132 = vshll.u32 %v1050, 16
        %v1134 = vrot.slane %v1132, 1
        %v1135 = vsel %vm777, %v1130, %v1134
        %v1137 = vshrl.u32 %v1027, 16
        %v1139 = vshll.u32 %v1027, 16
        %v1141 = vrot.slane %v1139, 1
        %v1142 = vor.u32 %v1137, %v1141
        %v1144 = vshll.u32 %v1051, 16
        %v1146 = vrot.slane %v1144, 1
        %v1147 = vsel %vm777, %v1142, %v1146
        %1148 = vrot.lane.b32.xlu0 %v1063, 64
        %v1149 = vpop.permute.xlu0 %1148
        %1150 = vrot.lane.b32.xlu0 %v1075, 64
        %v1151 = vpop.permute.xlu0 %1150
        %1152 = vrot.lane.b32.xlu0 %v1087, 64
        %v1153 = vpop.permute.xlu0 %1152
        %1154 = vrot.lane.b32.xlu0 %v1099, 64
        %v1155 = vpop.permute.xlu0 %1154
        %1156 = vrot.lane.b32.xlu0 %v1111, 64
        %v1157 = vpop.permute.xlu0 %1156
        %1158 = vrot.lane.b32.xlu0 %v1123, 64
        %v1159 = vpop.permute.xlu0 %1158
        %1160 = vrot.lane.b32.xlu0 %v1135, 64
        %v1161 = vpop.permute.xlu0 %1160
        %1162 = vrot.lane.b32.xlu0 %v1147, 64
        %v1163 = vpop.permute.xlu0 %1162
        %v1164 = vrot.slane %v1020, 1
        %v1165 = vrot.slane %v1044, 1
        %v1166 = vsel %vm890, %v1164, %v1165
        %v1167 = vrot.slane %v1021, 1
        %v1168 = vrot.slane %v1045, 1
        %v1169 = vsel %vm890, %v1167, %v1168
        %v1170 = vrot.slane %v1022, 1
        %v1171 = vrot.slane %v1046, 1
        %v1172 = vsel %vm890, %v1170, %v1171
        %v1173 = vrot.slane %v1023, 1
        %v1174 = vrot.slane %v1047, 1
        %v1175 = vsel %vm890, %v1173, %v1174
        %v1176 = vrot.slane %v1024, 1
        %v1177 = vrot.slane %v1048, 1
        %v1178 = vsel %vm890, %v1176, %v1177
        %v1179 = vrot.slane %v1025, 1
        %v1180 = vrot.slane %v1049, 1
        %v1181 = vsel %vm890, %v1179, %v1180
        %v1182 = vrot.slane %v1026, 1
        %v1183 = vrot.slane %v1050, 1
        %v1184 = vsel %vm890, %v1182, %v1183
        %v1185 = vrot.slane %v1027, 1
        %v1186 = vrot.slane %v1051, 1
        %v1187 = vsel %vm890, %v1185, %v1186
        %v1189 = vsel %vm915, %v1020, %v1149
        %v1192 = vsel %vm915, %v1021, %v1151
        %v1195 = vsel %vm915, %v1022, %v1153
        %v1198 = vsel %vm915, %v1023, %v1155
        %v1201 = vsel %vm915, %v1024, %v1157
        %v1204 = vsel %vm915, %v1025, %v1159
        %v1207 = vsel %vm915, %v1026, %v1161
        %v1210 = vsel %vm915, %v1027, %v1163
        %s1212 = scalar_lea.vmem [#allocation5], 192
        %v1213 = vld [vmem:[%s1212] sm:$0xff]
        %v1214 = vld [vmem:[%s1212 + $0x8] sm:$0xff]
        %v1215 = vld [vmem:[%s1212 + $0x10] sm:$0xff]
        %v1216 = vld [vmem:[%s1212 + $0x18] sm:$0xff]
        %v1217 = vld [vmem:[%s1212 + $0x20] sm:$0xff]
        %v1218 = vld [vmem:[%s1212 + $0x28] sm:$0xff]
        %v1219 = vld [vmem:[%s1212 + $0x30] sm:$0xff]
        %v1220 = vld [vmem:[%s1212 + $0x38] sm:$0xff]
        %v1221 = vld [vmem:[%s1212 + $0x40] sm:$0xff]
        %v1222 = vld [vmem:[%s1212 + $0x48] sm:$0xff]
        %v1223 = vld [vmem:[%s1212 + $0x50] sm:$0xff]
        %v1224 = vld [vmem:[%s1212 + $0x58] sm:$0xff]
        %v1225 = vld [vmem:[%s1212 + $0x60] sm:$0xff]
        %v1226 = vld [vmem:[%s1212 + $0x68] sm:$0xff]
        %v1227 = vld [vmem:[%s1212 + $0x70] sm:$0xff]
        %v1228 = vld [vmem:[%s1212 + $0x78] sm:$0xff]
        %v1229 = vld [vmem:[%s1212 + $0x80] sm:$0xff]
        %v1230 = vld [vmem:[%s1212 + $0x88] sm:$0xff]
        %v1231 = vld [vmem:[%s1212 + $0x90] sm:$0xff]
        %v1232 = vld [vmem:[%s1212 + $0x98] sm:$0xff]
        %v1233 = vld [vmem:[%s1212 + $0xa0] sm:$0xff]
        %v1234 = vld [vmem:[%s1212 + $0xa8] sm:$0xff]
        %v1235 = vld [vmem:[%s1212 + $0xb0] sm:$0xff]
        %v1236 = vld [vmem:[%s1212 + $0xb8] sm:$0xff]
        %v1261 = vunpack.c.l.b16 %v1213
        %v1262 = vunpack.c.h.b16 %v1213
        %v1263 = vunpack.c.l.b16 %v1214
        %v1264 = vunpack.c.h.b16 %v1214
        %v1265 = vunpack.c.l.b16 %v1215
        %v1266 = vunpack.c.h.b16 %v1215
        %v1267 = vunpack.c.l.b16 %v1216
        %v1268 = vunpack.c.h.b16 %v1216
        %v1269 = vunpack.c.l.b16 %v1217
        %v1270 = vunpack.c.h.b16 %v1217
        %v1271 = vunpack.c.l.b16 %v1218
        %v1272 = vunpack.c.h.b16 %v1218
        %v1273 = vunpack.c.l.b16 %v1219
        %v1274 = vunpack.c.h.b16 %v1219
        %v1275 = vunpack.c.l.b16 %v1220
        %v1276 = vunpack.c.h.b16 %v1220
        %v1277 = vunpack.c.l.b16 %v1221
        %v1278 = vunpack.c.h.b16 %v1221
        %v1279 = vunpack.c.l.b16 %v1222
        %v1280 = vunpack.c.h.b16 %v1222
        %v1281 = vunpack.c.l.b16 %v1223
        %v1282 = vunpack.c.h.b16 %v1223
        %v1283 = vunpack.c.l.b16 %v1224
        %v1284 = vunpack.c.h.b16 %v1224
        %v1285 = vunpack.c.l.b16 %v1225
        %v1286 = vunpack.c.h.b16 %v1225
        %v1287 = vunpack.c.l.b16 %v1226
        %v1288 = vunpack.c.h.b16 %v1226
        %v1289 = vunpack.c.l.b16 %v1227
        %v1290 = vunpack.c.h.b16 %v1227
        %v1291 = vunpack.c.l.b16 %v1228
        %v1292 = vunpack.c.h.b16 %v1228
        %v1293 = vunpack.c.l.b16 %v1229
        %v1294 = vunpack.c.h.b16 %v1229
        %v1295 = vunpack.c.l.b16 %v1230
        %v1296 = vunpack.c.h.b16 %v1230
        %v1297 = vunpack.c.l.b16 %v1231
        %v1298 = vunpack.c.h.b16 %v1231
        %v1299 = vunpack.c.l.b16 %v1232
        %v1300 = vunpack.c.h.b16 %v1232
        %v1301 = vunpack.c.l.b16 %v1233
        %v1302 = vunpack.c.h.b16 %v1233
        %v1303 = vunpack.c.l.b16 %v1234
        %v1304 = vunpack.c.h.b16 %v1234
        %v1305 = vunpack.c.l.b16 %v1235
        %v1306 = vunpack.c.h.b16 %v1235
        %v1307 = vunpack.c.l.b16 %v1236
        %v1308 = vunpack.c.h.b16 %v1236
        %v1309 = vpack.c.b16 %v1263, %v1261
        %v1310 = vpack.c.b16 %v1264, %v1262
        %v1311 = vpack.c.b16 %v1267, %v1265
        %v1312 = vpack.c.b16 %v1268, %v1266
        %v1313 = vpack.c.b16 %v1271, %v1269
        %v1314 = vpack.c.b16 %v1272, %v1270
        %v1315 = vpack.c.b16 %v1275, %v1273
        %v1316 = vpack.c.b16 %v1276, %v1274
        %v1317 = vpack.c.b16 %v1279, %v1277
        %v1318 = vpack.c.b16 %v1280, %v1278
        %v1319 = vpack.c.b16 %v1283, %v1281
        %v1320 = vpack.c.b16 %v1284, %v1282
        %v1321 = vpack.c.b16 %v1287, %v1285
        %v1322 = vpack.c.b16 %v1288, %v1286
        %v1323 = vpack.c.b16 %v1291, %v1289
        %v1324 = vpack.c.b16 %v1292, %v1290
        %v1325 = vpack.c.b16 %v1295, %v1293
        %v1326 = vpack.c.b16 %v1296, %v1294
        %v1327 = vpack.c.b16 %v1299, %v1297
        %v1328 = vpack.c.b16 %v1300, %v1298
        %v1329 = vpack.c.b16 %v1303, %v1301
        %v1330 = vpack.c.b16 %v1304, %v1302
        %v1331 = vpack.c.b16 %v1307, %v1305
        %v1332 = vpack.c.b16 %v1308, %v1306
        %v1358 = vsel %vm915, %v1166, 0
        %v1361 = vsel %vm915, %v1169, 0
        %v1364 = vsel %vm915, %v1172, 0
        %v1367 = vsel %vm915, %v1175, 0
        %v1370 = vsel %vm915, %v1178, 0
        %v1373 = vsel %vm915, %v1181, 0
        %v1376 = vsel %vm915, %v1184, 0
        %v1379 = vsel %vm915, %v1187, 0
        %1381 = vmatpush.bf16.msra.mxu0 %v1323
        %1382 = vmatpush.bf16.msra.mxu0 %v1321
        %1383 = vmatpush.bf16.msra.mxu0 %v1319
        %1384 = vmatpush.bf16.msra.mxu0 %v1317
        %1385 = vmatpush.bf16.msra.mxu0 %v1315
        %1386 = vmatpush.bf16.msra.mxu0 %v1313
        %1387 = vmatpush.bf16.msra.mxu0 %v1311
        %1388 = vmatpush.bf16.msra.mxu0 %v1309
        %1389 = vmatmul.bf16.gmra.mxu0 %v1189
        %v1390 = vpop.f32.mrf.mxu0
        %v1391 = vadd.f32 0.0, %v1390
        %v1392 = vpop.f32.mrf.mxu0
        %v1393 = vadd.f32 0.0, %v1392
        %1394 = vmatmul.bf16.gmra.mxu0 %v1192
        %v1395 = vpop.f32.mrf.mxu0
        %v1396 = vadd.f32 0.0, %v1395
        %v1397 = vpop.f32.mrf.mxu0
        %v1398 = vadd.f32 0.0, %v1397
        %1399 = vmatmul.bf16.gmra.mxu0 %v1195
        %v1400 = vpop.f32.mrf.mxu0
        %v1401 = vadd.f32 0.0, %v1400
        %v1402 = vpop.f32.mrf.mxu0
        %v1403 = vadd.f32 0.0, %v1402
        %1404 = vmatmul.bf16.gmra.mxu0 %v1198
        %v1405 = vpop.f32.mrf.mxu0
        %v1406 = vadd.f32 0.0, %v1405
        %v1407 = vpop.f32.mrf.mxu0
        %v1408 = vadd.f32 0.0, %v1407
        %1409 = vmatmul.bf16.gmra.mxu0 %v1201
        %v1410 = vpop.f32.mrf.mxu0
        %v1411 = vadd.f32 0.0, %v1410
        %v1412 = vpop.f32.mrf.mxu0
        %v1413 = vadd.f32 0.0, %v1412
        %1414 = vmatmul.bf16.gmra.mxu0 %v1204
        %v1415 = vpop.f32.mrf.mxu0
        %v1416 = vadd.f32 0.0, %v1415
        %v1417 = vpop.f32.mrf.mxu0
        %v1418 = vadd.f32 0.0, %v1417
        %1419 = vmatmul.bf16.gmra.mxu0 %v1207
        %v1420 = vpop.f32.mrf.mxu0
        %v1421 = vadd.f32 0.0, %v1420
        %v1422 = vpop.f32.mrf.mxu0
        %v1423 = vadd.f32 0.0, %v1422
        %1424 = vmatmul.bf16.gmra.mxu0 %v1210
        %v1425 = vpop.f32.mrf.mxu0
        %v1426 = vadd.f32 0.0, %v1425
        %v1427 = vpop.f32.mrf.mxu0
        %v1428 = vadd.f32 0.0, %v1427
        %1429 = vdwg.mxu0
        %1430 = vmatpush.bf16.msra.mxu0 0
        %1431 = vmatpush.bf16.msra.mxu0 0
        %1432 = vmatpush.bf16.msra.mxu0 0
        %1433 = vmatpush.bf16.msra.mxu0 0
        %1434 = vmatpush.bf16.msra.mxu0 %v1331
        %1435 = vmatpush.bf16.msra.mxu0 %v1329
        %1436 = vmatpush.bf16.msra.mxu0 %v1327
        %1437 = vmatpush.bf16.msra.mxu0 %v1325
        %1438 = vmatmul.bf16.gmra.mxu0 %v1358
        %v1439 = vpop.f32.mrf.mxu0
        %v1440 = vadd.f32 %v1391, %v1439
        %v1441 = vpop.f32.mrf.mxu0
        %v1442 = vadd.f32 %v1393, %v1441
        %1443 = vmatmul.bf16.gmra.mxu0 %v1361
        %v1444 = vpop.f32.mrf.mxu0
        %v1445 = vadd.f32 %v1396, %v1444
        %v1446 = vpop.f32.mrf.mxu0
        %v1447 = vadd.f32 %v1398, %v1446
        %1448 = vmatmul.bf16.gmra.mxu0 %v1364
        %v1449 = vpop.f32.mrf.mxu0
        %v1450 = vadd.f32 %v1401, %v1449
        %v1451 = vpop.f32.mrf.mxu0
        %v1452 = vadd.f32 %v1403, %v1451
        %1453 = vmatmul.bf16.gmra.mxu0 %v1367
        %v1454 = vpop.f32.mrf.mxu0
        %v1455 = vadd.f32 %v1406, %v1454
        %v1456 = vpop.f32.mrf.mxu0
        %v1457 = vadd.f32 %v1408, %v1456
        %1458 = vmatmul.bf16.gmra.mxu0 %v1370
        %v1459 = vpop.f32.mrf.mxu0
        %v1460 = vadd.f32 %v1411, %v1459
        %v1461 = vpop.f32.mrf.mxu0
        %v1462 = vadd.f32 %v1413, %v1461
        %1463 = vmatmul.bf16.gmra.mxu0 %v1373
        %v1464 = vpop.f32.mrf.mxu0
        %v1465 = vadd.f32 %v1416, %v1464
        %v1466 = vpop.f32.mrf.mxu0
        %v1467 = vadd.f32 %v1418, %v1466
        %1468 = vmatmul.bf16.gmra.mxu0 %v1376
        %v1469 = vpop.f32.mrf.mxu0
        %v1470 = vadd.f32 %v1421, %v1469
        %v1471 = vpop.f32.mrf.mxu0
        %v1472 = vadd.f32 %v1423, %v1471
        %1473 = vmatmul.bf16.gmra.mxu0 %v1379
        %v1474 = vpop.f32.mrf.mxu0
        %v1475 = vadd.f32 %v1426, %v1474
        %v1476 = vpop.f32.mrf.mxu0
        %v1477 = vadd.f32 %v1428, %v1476
        %1478 = vdwg.mxu0
        %1479 = vmatpush.bf16.msra.mxu0 %v1324
        %1480 = vmatpush.bf16.msra.mxu0 %v1322
        %1481 = vmatpush.bf16.msra.mxu0 %v1320
        %1482 = vmatpush.bf16.msra.mxu0 %v1318
        %1483 = vmatpush.bf16.msra.mxu0 %v1316
        %1484 = vmatpush.bf16.msra.mxu0 %v1314
        %1485 = vmatpush.bf16.msra.mxu0 %v1312
        %1486 = vmatpush.bf16.msra.mxu0 %v1310
        %1487 = vmatmul.bf16.gmra.mxu0 %v1189
        %v1488 = vpop.f32.mrf.mxu0
        %v1489 = vadd.f32 0.0, %v1488
        %v1490 = vpop.f32.mrf.mxu0
        %v1491 = vadd.f32 0.0, %v1490
        %1492 = vmatmul.bf16.gmra.mxu0 %v1192
        %v1493 = vpop.f32.mrf.mxu0
        %v1494 = vadd.f32 0.0, %v1493
        %v1495 = vpop.f32.mrf.mxu0
        %v1496 = vadd.f32 0.0, %v1495
        %1497 = vmatmul.bf16.gmra.mxu0 %v1195
        %v1498 = vpop.f32.mrf.mxu0
        %v1499 = vadd.f32 0.0, %v1498
        %v1500 = vpop.f32.mrf.mxu0
        %v1501 = vadd.f32 0.0, %v1500
        %1502 = vmatmul.bf16.gmra.mxu0 %v1198
        %v1503 = vpop.f32.mrf.mxu0
        %v1504 = vadd.f32 0.0, %v1503
        %v1505 = vpop.f32.mrf.mxu0
        %v1506 = vadd.f32 0.0, %v1505
        %1507 = vmatmul.bf16.gmra.mxu0 %v1201
        %v1508 = vpop.f32.mrf.mxu0
        %v1509 = vadd.f32 0.0, %v1508
        %v1510 = vpop.f32.mrf.mxu0
        %v1511 = vadd.f32 0.0, %v1510
        %1512 = vmatmul.bf16.gmra.mxu0 %v1204
        %v1513 = vpop.f32.mrf.mxu0
        %v1514 = vadd.f32 0.0, %v1513
        %v1515 = vpop.f32.mrf.mxu0
        %v1516 = vadd.f32 0.0, %v1515
        %1517 = vmatmul.bf16.gmra.mxu0 %v1207
        %v1518 = vpop.f32.mrf.mxu0
        %v1519 = vadd.f32 0.0, %v1518
        %v1520 = vpop.f32.mrf.mxu0
        %v1521 = vadd.f32 0.0, %v1520
        %1522 = vmatmul.bf16.gmra.mxu0 %v1210
        %v1523 = vpop.f32.mrf.mxu0
        %v1524 = vadd.f32 0.0, %v1523
        %v1525 = vpop.f32.mrf.mxu0
        %v1526 = vadd.f32 0.0, %v1525
        %1527 = vdwg.mxu0
        %1528 = vmatpush.bf16.msra.mxu0 0
        %1529 = vmatpush.bf16.msra.mxu0 0
        %1530 = vmatpush.bf16.msra.mxu0 0
        %1531 = vmatpush.bf16.msra.mxu0 0
        %1532 = vmatpush.bf16.msra.mxu0 %v1332
        %1533 = vmatpush.bf16.msra.mxu0 %v1330
        %1534 = vmatpush.bf16.msra.mxu0 %v1328
        %1535 = vmatpush.bf16.msra.mxu0 %v1326
        %1536 = vmatmul.bf16.gmra.mxu0 %v1358
        %v1537 = vpop.f32.mrf.mxu0
        %v1538 = vadd.f32 %v1489, %v1537
        %v1539 = vpop.f32.mrf.mxu0
        %v1540 = vadd.f32 %v1491, %v1539
        %1541 = vmatmul.bf16.gmra.mxu0 %v1361
        %v1542 = vpop.f32.mrf.mxu0
        %v1543 = vadd.f32 %v1494, %v1542
        %v1544 = vpop.f32.mrf.mxu0
        %v1545 = vadd.f32 %v1496, %v1544
        %1546 = vmatmul.bf16.gmra.mxu0 %v1364
        %v1547 = vpop.f32.mrf.mxu0
        %v1548 = vadd.f32 %v1499, %v1547
        %v1549 = vpop.f32.mrf.mxu0
        %v1550 = vadd.f32 %v1501, %v1549
        %1551 = vmatmul.bf16.gmra.mxu0 %v1367
        %v1552 = vpop.f32.mrf.mxu0
        %v1553 = vadd.f32 %v1504, %v1552
        %v1554 = vpop.f32.mrf.mxu0
        %v1555 = vadd.f32 %v1506, %v1554
        %1556 = vmatmul.bf16.gmra.mxu0 %v1370
        %v1557 = vpop.f32.mrf.mxu0
        %v1558 = vadd.f32 %v1509, %v1557
        %v1559 = vpop.f32.mrf.mxu0
        %v1560 = vadd.f32 %v1511, %v1559
        %1561 = vmatmul.bf16.gmra.mxu0 %v1373
        %v1562 = vpop.f32.mrf.mxu0
        %v1563 = vadd.f32 %v1514, %v1562
        %v1564 = vpop.f32.mrf.mxu0
        %v1565 = vadd.f32 %v1516, %v1564
        %1566 = vmatmul.bf16.gmra.mxu0 %v1376
        %v1567 = vpop.f32.mrf.mxu0
        %v1568 = vadd.f32 %v1519, %v1567
        %v1569 = vpop.f32.mrf.mxu0
        %v1570 = vadd.f32 %v1521, %v1569
        %1571 = vmatmul.bf16.gmra.mxu0 %v1379
        %v1572 = vpop.f32.mrf.mxu0
        %v1573 = vadd.f32 %v1524, %v1572
        %v1574 = vpop.f32.mrf.mxu0
        %v1575 = vadd.f32 %v1526, %v1574
        %1576 = vdwg.mxu0
        %v1601 = vunpack.c.l.b16 %v940
        %v1602 = vunpack.c.h.b16 %v940
        %v1603 = vunpack.c.l.b16 %v941
        %v1604 = vunpack.c.h.b16 %v941
        %v1605 = vunpack.c.l.b16 %v942
        %v1606 = vunpack.c.h.b16 %v942
        %v1607 = vunpack.c.l.b16 %v943
        %v1608 = vunpack.c.h.b16 %v943
        %v1609 = vunpack.c.l.b16 %v944
        %v1610 = vunpack.c.h.b16 %v944
        %v1611 = vunpack.c.l.b16 %v945
        %v1612 = vunpack.c.h.b16 %v945
        %v1613 = vunpack.c.l.b16 %v946
        %v1614 = vunpack.c.h.b16 %v946
        %v1615 = vunpack.c.l.b16 %v947
        %v1616 = vunpack.c.h.b16 %v947
        %v1617 = vunpack.c.l.b16 %v948
        %v1618 = vunpack.c.h.b16 %v948
        %v1619 = vunpack.c.l.b16 %v949
        %v1620 = vunpack.c.h.b16 %v949
        %v1621 = vunpack.c.l.b16 %v950
        %v1622 = vunpack.c.h.b16 %v950
        %v1623 = vunpack.c.l.b16 %v951
        %v1624 = vunpack.c.h.b16 %v951
        %v1625 = vunpack.c.l.b16 %v952
        %v1626 = vunpack.c.h.b16 %v952
        %v1627 = vunpack.c.l.b16 %v953
        %v1628 = vunpack.c.h.b16 %v953
        %v1629 = vunpack.c.l.b16 %v954
        %v1630 = vunpack.c.h.b16 %v954
        %v1631 = vunpack.c.l.b16 %v955
        %v1632 = vunpack.c.h.b16 %v955
        %v1633 = vunpack.c.l.b16 %v956
        %v1634 = vunpack.c.h.b16 %v956
        %v1635 = vunpack.c.l.b16 %v957
        %v1636 = vunpack.c.h.b16 %v957
        %v1637 = vunpack.c.l.b16 %v958
        %v1638 = vunpack.c.h.b16 %v958
        %v1639 = vunpack.c.l.b16 %v959
        %v1640 = vunpack.c.h.b16 %v959
        %v1641 = vunpack.c.l.b16 %v960
        %v1642 = vunpack.c.h.b16 %v960
        %v1643 = vunpack.c.l.b16 %v961
        %v1644 = vunpack.c.h.b16 %v961
        %v1645 = vunpack.c.l.b16 %v962
        %v1646 = vunpack.c.h.b16 %v962
        %v1647 = vunpack.c.l.b16 %v963
        %v1648 = vunpack.c.h.b16 %v963
        %v1649 = vpack.c.b16 %v1603, %v1601
        %v1650 = vpack.c.b16 %v1604, %v1602
        %v1651 = vpack.c.b16 %v1607, %v1605
        %v1652 = vpack.c.b16 %v1608, %v1606
        %v1653 = vpack.c.b16 %v1611, %v1609
        %v1654 = vpack.c.b16 %v1612, %v1610
        %v1655 = vpack.c.b16 %v1615, %v1613
        %v1656 = vpack.c.b16 %v1616, %v1614
        %v1657 = vpack.c.b16 %v1619, %v1617
        %v1658 = vpack.c.b16 %v1620, %v1618
        %v1659 = vpack.c.b16 %v1623, %v1621
        %v1660 = vpack.c.b16 %v1624, %v1622
        %v1661 = vpack.c.b16 %v1627, %v1625
        %v1662 = vpack.c.b16 %v1628, %v1626
        %v1663 = vpack.c.b16 %v1631, %v1629
        %v1664 = vpack.c.b16 %v1632, %v1630
        %v1665 = vpack.c.b16 %v1635, %v1633
        %v1666 = vpack.c.b16 %v1636, %v1634
        %v1667 = vpack.c.b16 %v1639, %v1637
        %v1668 = vpack.c.b16 %v1640, %v1638
        %v1669 = vpack.c.b16 %v1643, %v1641
        %v1670 = vpack.c.b16 %v1644, %v1642
        %v1671 = vpack.c.b16 %v1647, %v1645
        %v1672 = vpack.c.b16 %v1648, %v1646
        %v1698 = vsel %vm915, %v893, 0
        %v1701 = vsel %vm915, %v896, 0
        %v1704 = vsel %vm915, %v899, 0
        %v1707 = vsel %vm915, %v902, 0
        %v1710 = vsel %vm915, %v905, 0
        %v1713 = vsel %vm915, %v908, 0
        %v1716 = vsel %vm915, %v911, 0
        %v1719 = vsel %vm915, %v914, 0
        %1721 = vmatpush.bf16.msra.mxu0 %v1663
        %1722 = vmatpush.bf16.msra.mxu0 %v1661
        %1723 = vmatpush.bf16.msra.mxu0 %v1659
        %1724 = vmatpush.bf16.msra.mxu0 %v1657
        %1725 = vmatpush.bf16.msra.mxu0 %v1655
        %1726 = vmatpush.bf16.msra.mxu0 %v1653
        %1727 = vmatpush.bf16.msra.mxu0 %v1651
        %1728 = vmatpush.bf16.msra.mxu0 %v1649
        %1729 = vmatmul.bf16.gmra.mxu0 %v917
        %v1730 = vpop.f32.mrf.mxu0
        %v1731 = vadd.f32 %v1440, %v1730
        %v1732 = vpop.f32.mrf.mxu0
        %v1733 = vadd.f32 %v1442, %v1732
        %1734 = vmatmul.bf16.gmra.mxu0 %v920
        %v1735 = vpop.f32.mrf.mxu0
        %v1736 = vadd.f32 %v1445, %v1735
        %v1737 = vpop.f32.mrf.mxu0
        %v1738 = vadd.f32 %v1447, %v1737
        %1739 = vmatmul.bf16.gmra.mxu0 %v923
        %v1740 = vpop.f32.mrf.mxu0
        %v1741 = vadd.f32 %v1450, %v1740
        %v1742 = vpop.f32.mrf.mxu0
        %v1743 = vadd.f32 %v1452, %v1742
        %1744 = vmatmul.bf16.gmra.mxu0 %v926
        %v1745 = vpop.f32.mrf.mxu0
        %v1746 = vadd.f32 %v1455, %v1745
        %v1747 = vpop.f32.mrf.mxu0
        %v1748 = vadd.f32 %v1457, %v1747
        %1749 = vmatmul.bf16.gmra.mxu0 %v929
        %v1750 = vpop.f32.mrf.mxu0
        %v1751 = vadd.f32 %v1460, %v1750
        %v1752 = vpop.f32.mrf.mxu0
        %v1753 = vadd.f32 %v1462, %v1752
        %1754 = vmatmul.bf16.gmra.mxu0 %v932
        %v1755 = vpop.f32.mrf.mxu0
        %v1756 = vadd.f32 %v1465, %v1755
        %v1757 = vpop.f32.mrf.mxu0
        %v1758 = vadd.f32 %v1467, %v1757
        %1759 = vmatmul.bf16.gmra.mxu0 %v935
        %v1760 = vpop.f32.mrf.mxu0
        %v1761 = vadd.f32 %v1470, %v1760
        %v1762 = vpop.f32.mrf.mxu0
        %v1763 = vadd.f32 %v1472, %v1762
        %1764 = vmatmul.bf16.gmra.mxu0 %v938
        %v1765 = vpop.f32.mrf.mxu0
        %v1766 = vadd.f32 %v1475, %v1765
        %v1767 = vpop.f32.mrf.mxu0
        %v1768 = vadd.f32 %v1477, %v1767
        %1769 = vdwg.mxu0
        %1770 = vmatpush.bf16.msra.mxu0 0
        %1771 = vmatpush.bf16.msra.mxu0 0
        %1772 = vmatpush.bf16.msra.mxu0 0
        %1773 = vmatpush.bf16.msra.mxu0 0
        %1774 = vmatpush.bf16.msra.mxu0 %v1671
        %1775 = vmatpush.bf16.msra.mxu0 %v1669
        %1776 = vmatpush.bf16.msra.mxu0 %v1667
        %1777 = vmatpush.bf16.msra.mxu0 %v1665
        %1778 = vmatmul.bf16.gmra.mxu0 %v1698
        %v1779 = vpop.f32.mrf.mxu0
        %v1780 = vadd.f32 %v1731, %v1779
        %v1781 = vpop.f32.mrf.mxu0
        %v1782 = vadd.f32 %v1733, %v1781
        %1783 = vmatmul.bf16.gmra.mxu0 %v1701
        %v1784 = vpop.f32.mrf.mxu0
        %v1785 = vadd.f32 %v1736, %v1784
        %v1786 = vpop.f32.mrf.mxu0
        %v1787 = vadd.f32 %v1738, %v1786
        %1788 = vmatmul.bf16.gmra.mxu0 %v1704
        %v1789 = vpop.f32.mrf.mxu0
        %v1790 = vadd.f32 %v1741, %v1789
        %v1791 = vpop.f32.mrf.mxu0
        %v1792 = vadd.f32 %v1743, %v1791
        %1793 = vmatmul.bf16.gmra.mxu0 %v1707
        %v1794 = vpop.f32.mrf.mxu0
        %v1795 = vadd.f32 %v1746, %v1794
        %v1796 = vpop.f32.mrf.mxu0
        %v1797 = vadd.f32 %v1748, %v1796
        %1798 = vmatmul.bf16.gmra.mxu0 %v1710
        %v1799 = vpop.f32.mrf.mxu0
        %v1800 = vadd.f32 %v1751, %v1799
        %v1801 = vpop.f32.mrf.mxu0
        %v1802 = vadd.f32 %v1753, %v1801
        %1803 = vmatmul.bf16.gmra.mxu0 %v1713
        %v1804 = vpop.f32.mrf.mxu0
        %v1805 = vadd.f32 %v1756, %v1804
        %v1806 = vpop.f32.mrf.mxu0
        %v1807 = vadd.f32 %v1758, %v1806
        %1808 = vmatmul.bf16.gmra.mxu0 %v1716
        %v1809 = vpop.f32.mrf.mxu0
        %v1810 = vadd.f32 %v1761, %v1809
        %v1811 = vpop.f32.mrf.mxu0
        %v1812 = vadd.f32 %v1763, %v1811
        %1813 = vmatmul.bf16.gmra.mxu0 %v1719
        %v1814 = vpop.f32.mrf.mxu0
        %v1815 = vadd.f32 %v1766, %v1814
        %v1816 = vpop.f32.mrf.mxu0
        %v1817 = vadd.f32 %v1768, %v1816
        %1818 = vdwg.mxu0
        %1819 = vmatpush.bf16.msra.mxu0 %v1664
        %1820 = vmatpush.bf16.msra.mxu0 %v1662
        %1821 = vmatpush.bf16.msra.mxu0 %v1660
        %1822 = vmatpush.bf16.msra.mxu0 %v1658
        %1823 = vmatpush.bf16.msra.mxu0 %v1656
        %1824 = vmatpush.bf16.msra.mxu0 %v1654
        %1825 = vmatpush.bf16.msra.mxu0 %v1652
        %1826 = vmatpush.bf16.msra.mxu0 %v1650
        %1827 = vmatmul.bf16.gmra.mxu0 %v917
        %v1828 = vpop.f32.mrf.mxu0
        %v1829 = vadd.f32 %v1538, %v1828
        %v1830 = vpop.f32.mrf.mxu0
        %v1831 = vadd.f32 %v1540, %v1830
        %1832 = vmatmul.bf16.gmra.mxu0 %v920
        %v1833 = vpop.f32.mrf.mxu0
        %v1834 = vadd.f32 %v1543, %v1833
        %v1835 = vpop.f32.mrf.mxu0
        %v1836 = vadd.f32 %v1545, %v1835
        %1837 = vmatmul.bf16.gmra.mxu0 %v923
        %v1838 = vpop.f32.mrf.mxu0
        %v1839 = vadd.f32 %v1548, %v1838
        %v1840 = vpop.f32.mrf.mxu0
        %v1841 = vadd.f32 %v1550, %v1840
        %1842 = vmatmul.bf16.gmra.mxu0 %v926
        %v1843 = vpop.f32.mrf.mxu0
        %v1844 = vadd.f32 %v1553, %v1843
        %v1845 = vpop.f32.mrf.mxu0
        %v1846 = vadd.f32 %v1555, %v1845
        %1847 = vmatmul.bf16.gmra.mxu0 %v929
        %v1848 = vpop.f32.mrf.mxu0
        %v1849 = vadd.f32 %v1558, %v1848
        %v1850 = vpop.f32.mrf.mxu0
        %v1851 = vadd.f32 %v1560, %v1850
        %1852 = vmatmul.bf16.gmra.mxu0 %v932
        %v1853 = vpop.f32.mrf.mxu0
        %v1854 = vadd.f32 %v1563, %v1853
        %v1855 = vpop.f32.mrf.mxu0
        %v1856 = vadd.f32 %v1565, %v1855
        %1857 = vmatmul.bf16.gmra.mxu0 %v935
        %v1858 = vpop.f32.mrf.mxu0
        %v1859 = vadd.f32 %v1568, %v1858
        %v1860 = vpop.f32.mrf.mxu0
        %v1861 = vadd.f32 %v1570, %v1860
        %1862 = vmatmul.bf16.gmra.mxu0 %v938
        %v1863 = vpop.f32.mrf.mxu0
        %v1864 = vadd.f32 %v1573, %v1863
        %v1865 = vpop.f32.mrf.mxu0
        %v1866 = vadd.f32 %v1575, %v1865
        %1867 = vdwg.mxu0
        %1868 = vmatpush.bf16.msra.mxu0 0
        %1869 = vmatpush.bf16.msra.mxu0 0
        %1870 = vmatpush.bf16.msra.mxu0 0
        %1871 = vmatpush.bf16.msra.mxu0 0
        %1872 = vmatpush.bf16.msra.mxu0 %v1672
        %1873 = vmatpush.bf16.msra.mxu0 %v1670
        %1874 = vmatpush.bf16.msra.mxu0 %v1668
        %1875 = vmatpush.bf16.msra.mxu0 %v1666
        %1876 = vmatmul.bf16.gmra.mxu0 %v1698
        %v1877 = vpop.f32.mrf.mxu0
        %v1878 = vadd.f32 %v1829, %v1877
        %v1879 = vpop.f32.mrf.mxu0
        %v1880 = vadd.f32 %v1831, %v1879
        %1881 = vmatmul.bf16.gmra.mxu0 %v1701
        %v1882 = vpop.f32.mrf.mxu0
        %v1883 = vadd.f32 %v1834, %v1882
        %v1884 = vpop.f32.mrf.mxu0
        %v1885 = vadd.f32 %v1836, %v1884
        %1886 = vmatmul.bf16.gmra.mxu0 %v1704
        %v1887 = vpop.f32.mrf.mxu0
        %v1888 = vadd.f32 %v1839, %v1887
        %v1889 = vpop.f32.mrf.mxu0
        %v1890 = vadd.f32 %v1841, %v1889
        %1891 = vmatmul.bf16.gmra.mxu0 %v1707
        %v1892 = vpop.f32.mrf.mxu0
        %v1893 = vadd.f32 %v1844, %v1892
        %v1894 = vpop.f32.mrf.mxu0
        %v1895 = vadd.f32 %v1846, %v1894
        %1896 = vmatmul.bf16.gmra.mxu0 %v1710
        %v1897 = vpop.f32.mrf.mxu0
        %v1898 = vadd.f32 %v1849, %v1897
        %v1899 = vpop.f32.mrf.mxu0
        %v1900 = vadd.f32 %v1851, %v1899
        %1901 = vmatmul.bf16.gmra.mxu0 %v1713
        %v1902 = vpop.f32.mrf.mxu0
        %v1903 = vadd.f32 %v1854, %v1902
        %v1904 = vpop.f32.mrf.mxu0
        %v1905 = vadd.f32 %v1856, %v1904
        %1906 = vmatmul.bf16.gmra.mxu0 %v1716
        %v1907 = vpop.f32.mrf.mxu0
        %v1908 = vadd.f32 %v1859, %v1907
        %v1909 = vpop.f32.mrf.mxu0
        %v1910 = vadd.f32 %v1861, %v1909
        %1911 = vmatmul.bf16.gmra.mxu0 %v1719
        %v1912 = vpop.f32.mrf.mxu0
        %v1913 = vadd.f32 %v1864, %v1912
        %v1914 = vpop.f32.mrf.mxu0
        %v1915 = vadd.f32 %v1866, %v1914
        %1916 = vdwg.mxu0
        %s1917 = scalar_lea.vmem [#allocation2], 24
        %v1918 = vld [vmem:[%s1917] sm:$0xf]
        %v1919 = vld [vmem:[%s1917 + $0x4] sm:$0xf]
        %v1920 = vld [vmem:[%s1917 + $0x8] sm:$0x1]
        %v1921 = vld [vmem:[%s1917 + $0xc] sm:$0xf]
        %v1922 = vld [vmem:[%s1917 + $0x10] sm:$0xf]
        %v1923 = vld [vmem:[%s1917 + $0x14] sm:$0x1]
        %v1924 = vld [vmem:[%s1917 + $0x18] sm:$0xf]
        %v1925 = vld [vmem:[%s1917 + $0x1c] sm:$0xf]
        %v1926 = vld [vmem:[%s1917 + $0x20] sm:$0x1]
        %v1927 = vld [vmem:[%s1917 + $0x24] sm:$0xf]
        %v1928 = vld [vmem:[%s1917 + $0x28] sm:$0xf]
        %v1929 = vld [vmem:[%s1917 + $0x2c] sm:$0x1]
        %v1930 = vld [vmem:[%s1917 + $0x30] sm:$0xf]
        %v1931 = vld [vmem:[%s1917 + $0x34] sm:$0xf]
        %v1932 = vld [vmem:[%s1917 + $0x38] sm:$0x1]
        %v1933 = vld [vmem:[%s1917 + $0x3c] sm:$0xf]
        %v1934 = vld [vmem:[%s1917 + $0x40] sm:$0xf]
        %v1935 = vld [vmem:[%s1917 + $0x44] sm:$0x1]
        %v1936 = vld [vmem:[%s1917 + $0x48] sm:$0xf]
        %v1937 = vld [vmem:[%s1917 + $0x4c] sm:$0xf]
        %v1938 = vld [vmem:[%s1917 + $0x50] sm:$0x1]
        %v1939 = vld [vmem:[%s1917 + $0x54] sm:$0xf]
        %v1940 = vld [vmem:[%s1917 + $0x58] sm:$0xf]
        %v1941 = vld [vmem:[%s1917 + $0x5c] sm:$0x1]
        %v1958 = vunpack.c.l.b16 %v1918
        %v1959 = vunpack.c.l.b16 %v1919
        %v1960 = vunpack.c.l.b16 %v1921
        %v1961 = vunpack.c.l.b16 %v1922
        %v1962 = vunpack.c.l.b16 %v1924
        %v1963 = vunpack.c.l.b16 %v1925
        %v1964 = vunpack.c.l.b16 %v1927
        %v1965 = vunpack.c.l.b16 %v1928
        %v1966 = vunpack.c.l.b16 %v1930
        %v1967 = vunpack.c.l.b16 %v1931
        %v1968 = vunpack.c.l.b16 %v1933
        %v1969 = vunpack.c.l.b16 %v1934
        %v1970 = vunpack.c.l.b16 %v1936
        %v1971 = vunpack.c.l.b16 %v1937
        %v1972 = vunpack.c.l.b16 %v1939
        %v1973 = vunpack.c.l.b16 %v1940
        %v1974 = vpack.c.b16 %v1959, %v1958
        %v1975 = vpack.c.b16 %v1961, %v1960
        %v1976 = vpack.c.b16 %v1963, %v1962
        %v1977 = vpack.c.b16 %v1965, %v1964
        %v1978 = vpack.c.b16 %v1967, %v1966
        %v1979 = vpack.c.b16 %v1969, %v1968
        %v1980 = vpack.c.b16 %v1971, %v1970
        %v1981 = vpack.c.b16 %v1973, %v1972
        %v1990 = vunpack.c.l.b16 %v1920
        %v1991 = vunpack.c.l.b16 %v1923
        %v1992 = vunpack.c.l.b16 %v1926
        %v1993 = vunpack.c.l.b16 %v1929
        %v1994 = vunpack.c.l.b16 %v1932
        %v1995 = vunpack.c.l.b16 %v1935
        %v1996 = vunpack.c.l.b16 %v1938
        %v1997 = vunpack.c.l.b16 %v1941
        %v1998 = vpack.c.b16 %v1990, %v1990
        %v1999 = vpack.c.b16 %v1991, %v1991
        %v2000 = vpack.c.b16 %v1992, %v1992
        %v2001 = vpack.c.b16 %v1993, %v1993
        %v2002 = vpack.c.b16 %v1994, %v1994
        %v2003 = vpack.c.b16 %v1995, %v1995
        %v2004 = vpack.c.b16 %v1996, %v1996
        %v2005 = vpack.c.b16 %v1997, %v1997
        %v2007 = vshrl.u32 %v1974, 16
        %v2009 = vshll.u32 %v1974, 16
        %v2011 = vrot.slane %v2009, 1
        %v2012 = vor.u32 %v2007, %v2011
        %v2014 = vshll.u32 %v1998, 16
        %v2016 = vrot.slane %v2014, 1
        %v2017 = vsel %vm777, %v2012, %v2016
        %v2019 = vshrl.u32 %v1975, 16
        %v2021 = vshll.u32 %v1975, 16
        %v2023 = vrot.slane %v2021, 1
        %v2024 = vor.u32 %v2019, %v2023
        %v2026 = vshll.u32 %v1999, 16
        %v2028 = vrot.slane %v2026, 1
        %v2029 = vsel %vm777, %v2024, %v2028
        %v2031 = vshrl.u32 %v1976, 16
        %v2033 = vshll.u32 %v1976, 16
        %v2035 = vrot.slane %v2033, 1
        %v2036 = vor.u32 %v2031, %v2035
        %v2038 = vshll.u32 %v2000, 16
        %v2040 = vrot.slane %v2038, 1
        %v2041 = vsel %vm777, %v2036, %v2040
        %v2043 = vshrl.u32 %v1977, 16
        %v2045 = vshll.u32 %v1977, 16
        %v2047 = vrot.slane %v2045, 1
        %v2048 = vor.u32 %v2043, %v2047
        %v2050 = vshll.u32 %v2001, 16
        %v2052 = vrot.slane %v2050, 1
        %v2053 = vsel %vm777, %v2048, %v2052
        %v2055 = vshrl.u32 %v1978, 16
        %v2057 = vshll.u32 %v1978, 16
        %v2059 = vrot.slane %v2057, 1
        %v2060 = vor.u32 %v2055, %v2059
        %v2062 = vshll.u32 %v2002, 16
        %v2064 = vrot.slane %v2062, 1
        %v2065 = vsel %vm777, %v2060, %v2064
        %v2067 = vshrl.u32 %v1979, 16
        %v2069 = vshll.u32 %v1979, 16
        %v2071 = vrot.slane %v2069, 1
        %v2072 = vor.u32 %v2067, %v2071
        %v2074 = vshll.u32 %v2003, 16
        %v2076 = vrot.slane %v2074, 1
        %v2077 = vsel %vm777, %v2072, %v2076
        %v2079 = vshrl.u32 %v1980, 16
        %v2081 = vshll.u32 %v1980, 16
        %v2083 = vrot.slane %v2081, 1
        %v2084 = vor.u32 %v2079, %v2083
        %v2086 = vshll.u32 %v2004, 16
        %v2088 = vrot.slane %v2086, 1
        %v2089 = vsel %vm777, %v2084, %v2088
        %v2091 = vshrl.u32 %v1981, 16
        %v2093 = vshll.u32 %v1981, 16
        %v2095 = vrot.slane %v2093, 1
        %v2096 = vor.u32 %v2091, %v2095
        %v2098 = vshll.u32 %v2005, 16
        %v2100 = vrot.slane %v2098, 1
        %v2101 = vsel %vm777, %v2096, %v2100
        %2102 = vrot.lane.b32.xlu0 %v2017, 64
        %v2103 = vpop.permute.xlu0 %2102
        %2104 = vrot.lane.b32.xlu0 %v2029, 64
        %v2105 = vpop.permute.xlu0 %2104
        %2106 = vrot.lane.b32.xlu0 %v2041, 64
        %v2107 = vpop.permute.xlu0 %2106
        %2108 = vrot.lane.b32.xlu0 %v2053, 64
        %v2109 = vpop.permute.xlu0 %2108
        %2110 = vrot.lane.b32.xlu0 %v2065, 64
        %v2111 = vpop.permute.xlu0 %2110
        %2112 = vrot.lane.b32.xlu0 %v2077, 64
        %v2113 = vpop.permute.xlu0 %2112
        %2114 = vrot.lane.b32.xlu0 %v2089, 64
        %v2115 = vpop.permute.xlu0 %2114
        %2116 = vrot.lane.b32.xlu0 %v2101, 64
        %v2117 = vpop.permute.xlu0 %2116
        %v2118 = vrot.slane %v1974, 1
        %v2119 = vrot.slane %v1998, 1
        %v2120 = vsel %vm890, %v2118, %v2119
        %v2121 = vrot.slane %v1975, 1
        %v2122 = vrot.slane %v1999, 1
        %v2123 = vsel %vm890, %v2121, %v2122
        %v2124 = vrot.slane %v1976, 1
        %v2125 = vrot.slane %v2000, 1
        %v2126 = vsel %vm890, %v2124, %v2125
        %v2127 = vrot.slane %v1977, 1
        %v2128 = vrot.slane %v2001, 1
        %v2129 = vsel %vm890, %v2127, %v2128
        %v2130 = vrot.slane %v1978, 1
        %v2131 = vrot.slane %v2002, 1
        %v2132 = vsel %vm890, %v2130, %v2131
        %v2133 = vrot.slane %v1979, 1
        %v2134 = vrot.slane %v2003, 1
        %v2135 = vsel %vm890, %v2133, %v2134
        %v2136 = vrot.slane %v1980, 1
        %v2137 = vrot.slane %v2004, 1
        %v2138 = vsel %vm890, %v2136, %v2137
        %v2139 = vrot.slane %v1981, 1
        %v2140 = vrot.slane %v2005, 1
        %v2141 = vsel %vm890, %v2139, %v2140
        %v2143 = vsel %vm915, %v1974, %v2103
        %v2146 = vsel %vm915, %v1975, %v2105
        %v2149 = vsel %vm915, %v1976, %v2107
        %v2152 = vsel %vm915, %v1977, %v2109
        %v2155 = vsel %vm915, %v1978, %v2111
        %v2158 = vsel %vm915, %v1979, %v2113
        %v2161 = vsel %vm915, %v1980, %v2115
        %v2164 = vsel %vm915, %v1981, %v2117
        %s2166 = scalar_lea.vmem [#allocation5], 384
        %v2167 = vld [vmem:[%s2166] sm:$0xff]
        %v2168 = vld [vmem:[%s2166 + $0x8] sm:$0xff]
        %v2169 = vld [vmem:[%s2166 + $0x10] sm:$0xff]
        %v2170 = vld [vmem:[%s2166 + $0x18] sm:$0xff]
        %v2171 = vld [vmem:[%s2166 + $0x20] sm:$0xff]
        %v2172 = vld [vmem:[%s2166 + $0x28] sm:$0xff]
        %v2173 = vld [vmem:[%s2166 + $0x30] sm:$0xff]
        %v2174 = vld [vmem:[%s2166 + $0x38] sm:$0xff]
        %v2175 = vld [vmem:[%s2166 + $0x40] sm:$0xff]
        %v2176 = vld [vmem:[%s2166 + $0x48] sm:$0xff]
        %v2177 = vld [vmem:[%s2166 + $0x50] sm:$0xff]
        %v2178 = vld [vmem:[%s2166 + $0x58] sm:$0xff]
        %v2179 = vld [vmem:[%s2166 + $0x60] sm:$0xff]
        %v2180 = vld [vmem:[%s2166 + $0x68] sm:$0xff]
        %v2181 = vld [vmem:[%s2166 + $0x70] sm:$0xff]
        %v2182 = vld [vmem:[%s2166 + $0x78] sm:$0xff]
        %v2183 = vld [vmem:[%s2166 + $0x80] sm:$0xff]
        %v2184 = vld [vmem:[%s2166 + $0x88] sm:$0xff]
        %v2185 = vld [vmem:[%s2166 + $0x90] sm:$0xff]
        %v2186 = vld [vmem:[%s2166 + $0x98] sm:$0xff]
        %v2187 = vld [vmem:[%s2166 + $0xa0] sm:$0xff]
        %v2188 = vld [vmem:[%s2166 + $0xa8] sm:$0xff]
        %v2189 = vld [vmem:[%s2166 + $0xb0] sm:$0xff]
        %v2190 = vld [vmem:[%s2166 + $0xb8] sm:$0xff]
        %v2215 = vunpack.c.l.b16 %v2167
        %v2216 = vunpack.c.h.b16 %v2167
        %v2217 = vunpack.c.l.b16 %v2168
        %v2218 = vunpack.c.h.b16 %v2168
        %v2219 = vunpack.c.l.b16 %v2169
        %v2220 = vunpack.c.h.b16 %v2169
        %v2221 = vunpack.c.l.b16 %v2170
        %v2222 = vunpack.c.h.b16 %v2170
        %v2223 = vunpack.c.l.b16 %v2171
        %v2224 = vunpack.c.h.b16 %v2171
        %v2225 = vunpack.c.l.b16 %v2172
        %v2226 = vunpack.c.h.b16 %v2172
        %v2227 = vunpack.c.l.b16 %v2173
        %v2228 = vunpack.c.h.b16 %v2173
        %v2229 = vunpack.c.l.b16 %v2174
        %v2230 = vunpack.c.h.b16 %v2174
        %v2231 = vunpack.c.l.b16 %v2175
        %v2232 = vunpack.c.h.b16 %v2175
        %v2233 = vunpack.c.l.b16 %v2176
        %v2234 = vunpack.c.h.b16 %v2176
        %v2235 = vunpack.c.l.b16 %v2177
        %v2236 = vunpack.c.h.b16 %v2177
        %v2237 = vunpack.c.l.b16 %v2178
        %v2238 = vunpack.c.h.b16 %v2178
        %v2239 = vunpack.c.l.b16 %v2179
        %v2240 = vunpack.c.h.b16 %v2179
        %v2241 = vunpack.c.l.b16 %v2180
        %v2242 = vunpack.c.h.b16 %v2180
        %v2243 = vunpack.c.l.b16 %v2181
        %v2244 = vunpack.c.h.b16 %v2181
        %v2245 = vunpack.c.l.b16 %v2182
        %v2246 = vunpack.c.h.b16 %v2182
        %v2247 = vunpack.c.l.b16 %v2183
        %v2248 = vunpack.c.h.b16 %v2183
        %v2249 = vunpack.c.l.b16 %v2184
        %v2250 = vunpack.c.h.b16 %v2184
        %v2251 = vunpack.c.l.b16 %v2185
        %v2252 = vunpack.c.h.b16 %v2185
        %v2253 = vunpack.c.l.b16 %v2186
        %v2254 = vunpack.c.h.b16 %v2186
        %v2255 = vunpack.c.l.b16 %v2187
        %v2256 = vunpack.c.h.b16 %v2187
        %v2257 = vunpack.c.l.b16 %v2188
        %v2258 = vunpack.c.h.b16 %v2188
        %v2259 = vunpack.c.l.b16 %v2189
        %v2260 = vunpack.c.h.b16 %v2189
        %v2261 = vunpack.c.l.b16 %v2190
        %v2262 = vunpack.c.h.b16 %v2190
        %v2263 = vpack.c.b16 %v2217, %v2215
        %v2264 = vpack.c.b16 %v2218, %v2216
        %v2265 = vpack.c.b16 %v2221, %v2219
        %v2266 = vpack.c.b16 %v2222, %v2220
        %v2267 = vpack.c.b16 %v2225, %v2223
        %v2268 = vpack.c.b16 %v2226, %v2224
        %v2269 = vpack.c.b16 %v2229, %v2227
        %v2270 = vpack.c.b16 %v2230, %v2228
        %v2271 = vpack.c.b16 %v2233, %v2231
        %v2272 = vpack.c.b16 %v2234, %v2232
        %v2273 = vpack.c.b16 %v2237, %v2235
        %v2274 = vpack.c.b16 %v2238, %v2236
        %v2275 = vpack.c.b16 %v2241, %v2239
        %v2276 = vpack.c.b16 %v2242, %v2240
        %v2277 = vpack.c.b16 %v2245, %v2243
        %v2278 = vpack.c.b16 %v2246, %v2244
        %v2279 = vpack.c.b16 %v2249, %v2247
        %v2280 = vpack.c.b16 %v2250, %v2248
        %v2281 = vpack.c.b16 %v2253, %v2251
        %v2282 = vpack.c.b16 %v2254, %v2252
        %v2283 = vpack.c.b16 %v2257, %v2255
        %v2284 = vpack.c.b16 %v2258, %v2256
        %v2285 = vpack.c.b16 %v2261, %v2259
        %v2286 = vpack.c.b16 %v2262, %v2260
        %v2312 = vsel %vm915, %v2120, 0
        %v2315 = vsel %vm915, %v2123, 0
        %v2318 = vsel %vm915, %v2126, 0
        %v2321 = vsel %vm915, %v2129, 0
        %v2324 = vsel %vm915, %v2132, 0
        %v2327 = vsel %vm915, %v2135, 0
        %v2330 = vsel %vm915, %v2138, 0
        %v2333 = vsel %vm915, %v2141, 0
        %2335 = vmatpush.bf16.msra.mxu0 %v2277
        %2336 = vmatpush.bf16.msra.mxu0 %v2275
        %2337 = vmatpush.bf16.msra.mxu0 %v2273
        %2338 = vmatpush.bf16.msra.mxu0 %v2271
        %2339 = vmatpush.bf16.msra.mxu0 %v2269
        %2340 = vmatpush.bf16.msra.mxu0 %v2267
        %2341 = vmatpush.bf16.msra.mxu0 %v2265
        %2342 = vmatpush.bf16.msra.mxu0 %v2263
        %2343 = vmatmul.bf16.gmra.mxu0 %v2143
        %v2344 = vpop.f32.mrf.mxu0
        %v2345 = vadd.f32 0.0, %v2344
        %v2346 = vpop.f32.mrf.mxu0
        %v2347 = vadd.f32 0.0, %v2346
        %2348 = vmatmul.bf16.gmra.mxu0 %v2146
        %v2349 = vpop.f32.mrf.mxu0
        %v2350 = vadd.f32 0.0, %v2349
        %v2351 = vpop.f32.mrf.mxu0
        %v2352 = vadd.f32 0.0, %v2351
        %2353 = vmatmul.bf16.gmra.mxu0 %v2149
        %v2354 = vpop.f32.mrf.mxu0
        %v2355 = vadd.f32 0.0, %v2354
        %v2356 = vpop.f32.mrf.mxu0
        %v2357 = vadd.f32 0.0, %v2356
        %2358 = vmatmul.bf16.gmra.mxu0 %v2152
        %v2359 = vpop.f32.mrf.mxu0
        %v2360 = vadd.f32 0.0, %v2359
        %v2361 = vpop.f32.mrf.mxu0
        %v2362 = vadd.f32 0.0, %v2361
        %2363 = vmatmul.bf16.gmra.mxu0 %v2155
        %v2364 = vpop.f32.mrf.mxu0
        %v2365 = vadd.f32 0.0, %v2364
        %v2366 = vpop.f32.mrf.mxu0
        %v2367 = vadd.f32 0.0, %v2366
        %2368 = vmatmul.bf16.gmra.mxu0 %v2158
        %v2369 = vpop.f32.mrf.mxu0
        %v2370 = vadd.f32 0.0, %v2369
        %v2371 = vpop.f32.mrf.mxu0
        %v2372 = vadd.f32 0.0, %v2371
        %2373 = vmatmul.bf16.gmra.mxu0 %v2161
        %v2374 = vpop.f32.mrf.mxu0
        %v2375 = vadd.f32 0.0, %v2374
        %v2376 = vpop.f32.mrf.mxu0
        %v2377 = vadd.f32 0.0, %v2376
        %2378 = vmatmul.bf16.gmra.mxu0 %v2164
        %v2379 = vpop.f32.mrf.mxu0
        %v2380 = vadd.f32 0.0, %v2379
        %v2381 = vpop.f32.mrf.mxu0
        %v2382 = vadd.f32 0.0, %v2381
        %2383 = vdwg.mxu0
        %2384 = vmatpush.bf16.msra.mxu0 0
        %2385 = vmatpush.bf16.msra.mxu0 0
        %2386 = vmatpush.bf16.msra.mxu0 0
        %2387 = vmatpush.bf16.msra.mxu0 0
        %2388 = vmatpush.bf16.msra.mxu0 %v2285
        %2389 = vmatpush.bf16.msra.mxu0 %v2283
        %2390 = vmatpush.bf16.msra.mxu0 %v2281
        %2391 = vmatpush.bf16.msra.mxu0 %v2279
        %2392 = vmatmul.bf16.gmra.mxu0 %v2312
        %v2393 = vpop.f32.mrf.mxu0
        %v2394 = vadd.f32 %v2345, %v2393
        %v2395 = vpop.f32.mrf.mxu0
        %v2396 = vadd.f32 %v2347, %v2395
        %2397 = vmatmul.bf16.gmra.mxu0 %v2315
        %v2398 = vpop.f32.mrf.mxu0
        %v2399 = vadd.f32 %v2350, %v2398
        %v2400 = vpop.f32.mrf.mxu0
        %v2401 = vadd.f32 %v2352, %v2400
        %2402 = vmatmul.bf16.gmra.mxu0 %v2318
        %v2403 = vpop.f32.mrf.mxu0
        %v2404 = vadd.f32 %v2355, %v2403
        %v2405 = vpop.f32.mrf.mxu0
        %v2406 = vadd.f32 %v2357, %v2405
        %2407 = vmatmul.bf16.gmra.mxu0 %v2321
        %v2408 = vpop.f32.mrf.mxu0
        %v2409 = vadd.f32 %v2360, %v2408
        %v2410 = vpop.f32.mrf.mxu0
        %v2411 = vadd.f32 %v2362, %v2410
        %2412 = vmatmul.bf16.gmra.mxu0 %v2324
        %v2413 = vpop.f32.mrf.mxu0
        %v2414 = vadd.f32 %v2365, %v2413
        %v2415 = vpop.f32.mrf.mxu0
        %v2416 = vadd.f32 %v2367, %v2415
        %2417 = vmatmul.bf16.gmra.mxu0 %v2327
        %v2418 = vpop.f32.mrf.mxu0
        %v2419 = vadd.f32 %v2370, %v2418
        %v2420 = vpop.f32.mrf.mxu0
        %v2421 = vadd.f32 %v2372, %v2420
        %2422 = vmatmul.bf16.gmra.mxu0 %v2330
        %v2423 = vpop.f32.mrf.mxu0
        %v2424 = vadd.f32 %v2375, %v2423
        %v2425 = vpop.f32.mrf.mxu0
        %v2426 = vadd.f32 %v2377, %v2425
        %2427 = vmatmul.bf16.gmra.mxu0 %v2333
        %v2428 = vpop.f32.mrf.mxu0
        %v2429 = vadd.f32 %v2380, %v2428
        %v2430 = vpop.f32.mrf.mxu0
        %v2431 = vadd.f32 %v2382, %v2430
        %2432 = vdwg.mxu0
        %2433 = vmatpush.bf16.msra.mxu0 %v2278
        %2434 = vmatpush.bf16.msra.mxu0 %v2276
        %2435 = vmatpush.bf16.msra.mxu0 %v2274
        %2436 = vmatpush.bf16.msra.mxu0 %v2272
        %2437 = vmatpush.bf16.msra.mxu0 %v2270
        %2438 = vmatpush.bf16.msra.mxu0 %v2268
        %2439 = vmatpush.bf16.msra.mxu0 %v2266
        %2440 = vmatpush.bf16.msra.mxu0 %v2264
        %2441 = vmatmul.bf16.gmra.mxu0 %v2143
        %v2442 = vpop.f32.mrf.mxu0
        %v2443 = vadd.f32 0.0, %v2442
        %v2444 = vpop.f32.mrf.mxu0
        %v2445 = vadd.f32 0.0, %v2444
        %2446 = vmatmul.bf16.gmra.mxu0 %v2146
        %v2447 = vpop.f32.mrf.mxu0
        %v2448 = vadd.f32 0.0, %v2447
        %v2449 = vpop.f32.mrf.mxu0
        %v2450 = vadd.f32 0.0, %v2449
        %2451 = vmatmul.bf16.gmra.mxu0 %v2149
        %v2452 = vpop.f32.mrf.mxu0
        %v2453 = vadd.f32 0.0, %v2452
        %v2454 = vpop.f32.mrf.mxu0
        %v2455 = vadd.f32 0.0, %v2454
        %2456 = vmatmul.bf16.gmra.mxu0 %v2152
        %v2457 = vpop.f32.mrf.mxu0
        %v2458 = vadd.f32 0.0, %v2457
        %v2459 = vpop.f32.mrf.mxu0
        %v2460 = vadd.f32 0.0, %v2459
        %2461 = vmatmul.bf16.gmra.mxu0 %v2155
        %v2462 = vpop.f32.mrf.mxu0
        %v2463 = vadd.f32 0.0, %v2462
        %v2464 = vpop.f32.mrf.mxu0
        %v2465 = vadd.f32 0.0, %v2464
        %2466 = vmatmul.bf16.gmra.mxu0 %v2158
        %v2467 = vpop.f32.mrf.mxu0
        %v2468 = vadd.f32 0.0, %v2467
        %v2469 = vpop.f32.mrf.mxu0
        %v2470 = vadd.f32 0.0, %v2469
        %2471 = vmatmul.bf16.gmra.mxu0 %v2161
        %v2472 = vpop.f32.mrf.mxu0
        %v2473 = vadd.f32 0.0, %v2472
        %v2474 = vpop.f32.mrf.mxu0
        %v2475 = vadd.f32 0.0, %v2474
        %2476 = vmatmul.bf16.gmra.mxu0 %v2164
        %v2477 = vpop.f32.mrf.mxu0
        %v2478 = vadd.f32 0.0, %v2477
        %v2479 = vpop.f32.mrf.mxu0
        %v2480 = vadd.f32 0.0, %v2479
        %2481 = vdwg.mxu0
        %2482 = vmatpush.bf16.msra.mxu0 0
        %2483 = vmatpush.bf16.msra.mxu0 0
        %2484 = vmatpush.bf16.msra.mxu0 0
        %2485 = vmatpush.bf16.msra.mxu0 0
        %2486 = vmatpush.bf16.msra.mxu0 %v2286
        %2487 = vmatpush.bf16.msra.mxu0 %v2284
        %2488 = vmatpush.bf16.msra.mxu0 %v2282
        %2489 = vmatpush.bf16.msra.mxu0 %v2280
        %2490 = vmatmul.bf16.gmra.mxu0 %v2312
        %v2491 = vpop.f32.mrf.mxu0
        %v2492 = vadd.f32 %v2443, %v2491
        %v2493 = vpop.f32.mrf.mxu0
        %v2494 = vadd.f32 %v2445, %v2493
        %2495 = vmatmul.bf16.gmra.mxu0 %v2315
        %v2496 = vpop.f32.mrf.mxu0
        %v2497 = vadd.f32 %v2448, %v2496
        %v2498 = vpop.f32.mrf.mxu0
        %v2499 = vadd.f32 %v2450, %v2498
        %2500 = vmatmul.bf16.gmra.mxu0 %v2318
        %v2501 = vpop.f32.mrf.mxu0
        %v2502 = vadd.f32 %v2453, %v2501
        %v2503 = vpop.f32.mrf.mxu0
        %v2504 = vadd.f32 %v2455, %v2503
        %2505 = vmatmul.bf16.gmra.mxu0 %v2321
        %v2506 = vpop.f32.mrf.mxu0
        %v2507 = vadd.f32 %v2458, %v2506
        %v2508 = vpop.f32.mrf.mxu0
        %v2509 = vadd.f32 %v2460, %v2508
        %2510 = vmatmul.bf16.gmra.mxu0 %v2324
        %v2511 = vpop.f32.mrf.mxu0
        %v2512 = vadd.f32 %v2463, %v2511
        %v2513 = vpop.f32.mrf.mxu0
        %v2514 = vadd.f32 %v2465, %v2513
        %2515 = vmatmul.bf16.gmra.mxu0 %v2327
        %v2516 = vpop.f32.mrf.mxu0
        %v2517 = vadd.f32 %v2468, %v2516
        %v2518 = vpop.f32.mrf.mxu0
        %v2519 = vadd.f32 %v2470, %v2518
        %2520 = vmatmul.bf16.gmra.mxu0 %v2330
        %v2521 = vpop.f32.mrf.mxu0
        %v2522 = vadd.f32 %v2473, %v2521
        %v2523 = vpop.f32.mrf.mxu0
        %v2524 = vadd.f32 %v2475, %v2523
        %2525 = vmatmul.bf16.gmra.mxu0 %v2333
        %v2526 = vpop.f32.mrf.mxu0
        %v2527 = vadd.f32 %v2478, %v2526
        %v2528 = vpop.f32.mrf.mxu0
        %v2529 = vadd.f32 %v2480, %v2528
        %2530 = vdwg.mxu0
        %v2531 = vadd.f32 %v1780, %v2394
        %v2532 = vadd.f32 %v1878, %v2492
        %v2533 = vadd.f32 %v1782, %v2396
        %v2534 = vadd.f32 %v1880, %v2494
        %v2535 = vadd.f32 %v1785, %v2399
        %v2536 = vadd.f32 %v1883, %v2497
        %v2537 = vadd.f32 %v1787, %v2401
        %v2538 = vadd.f32 %v1885, %v2499
        %v2539 = vadd.f32 %v1790, %v2404
        %v2540 = vadd.f32 %v1888, %v2502
        %v2541 = vadd.f32 %v1792, %v2406
        %v2542 = vadd.f32 %v1890, %v2504
        %v2543 = vadd.f32 %v1795, %v2409
        %v2544 = vadd.f32 %v1893, %v2507
        %v2545 = vadd.f32 %v1797, %v2411
        %v2546 = vadd.f32 %v1895, %v2509
        %v2547 = vadd.f32 %v1800, %v2414
        %v2548 = vadd.f32 %v1898, %v2512
        %v2549 = vadd.f32 %v1802, %v2416
        %v2550 = vadd.f32 %v1900, %v2514
        %v2551 = vadd.f32 %v1805, %v2419
        %v2552 = vadd.f32 %v1903, %v2517
        %v2553 = vadd.f32 %v1807, %v2421
        %v2554 = vadd.f32 %v1905, %v2519
        %v2555 = vadd.f32 %v1810, %v2424
        %v2556 = vadd.f32 %v1908, %v2522
        %v2557 = vadd.f32 %v1812, %v2426
        %v2558 = vadd.f32 %v1910, %v2524
        %v2559 = vadd.f32 %v1815, %v2429
        %v2560 = vadd.f32 %v1913, %v2527
        %v2561 = vadd.f32 %v1817, %v2431
        %v2562 = vadd.f32 %v1915, %v2529
        %v2563 = vld [vmem:[#allocation7] sm:$0x3]
        %v2565 = vperm.slane %v2563, 0
        %v2566 = vperm.slane %v2563, 1
        %v2569 = vadd.f32 %v2531, %v2565
        %v2570 = vadd.f32 %v2532, %v2566
        %v2571 = vadd.f32 %v2533, %v2565
        %v2572 = vadd.f32 %v2534, %v2566
        %v2573 = vadd.f32 %v2535, %v2565
        %v2574 = vadd.f32 %v2536, %v2566
        %v2575 = vadd.f32 %v2537, %v2565
        %v2576 = vadd.f32 %v2538, %v2566
        %v2577 = vadd.f32 %v2539, %v2565
        %v2578 = vadd.f32 %v2540, %v2566
        %v2579 = vadd.f32 %v2541, %v2565
        %v2580 = vadd.f32 %v2542, %v2566
        %v2581 = vadd.f32 %v2543, %v2565
        %v2582 = vadd.f32 %v2544, %v2566
        %v2583 = vadd.f32 %v2545, %v2565
        %v2584 = vadd.f32 %v2546, %v2566
        %v2585 = vadd.f32 %v2547, %v2565
        %v2586 = vadd.f32 %v2548, %v2566
        %v2587 = vadd.f32 %v2549, %v2565
        %v2588 = vadd.f32 %v2550, %v2566
        %v2589 = vadd.f32 %v2551, %v2565
        %v2590 = vadd.f32 %v2552, %v2566
        %v2591 = vadd.f32 %v2553, %v2565
        %v2592 = vadd.f32 %v2554, %v2566
        %v2593 = vadd.f32 %v2555, %v2565
        %v2594 = vadd.f32 %v2556, %v2566
        %v2595 = vadd.f32 %v2557, %v2565
        %v2596 = vadd.f32 %v2558, %v2566
        %v2597 = vadd.f32 %v2559, %v2565
        %v2598 = vadd.f32 %v2560, %v2566
        %v2599 = vadd.f32 %v2561, %v2565
        %v2600 = vadd.f32 %v2562, %v2566
        %v2601 = vmax.f32 %v2569, 0.0
        %v2602 = vmax.f32 %v2570, 0.0
        %v2603 = vmax.f32 %v2571, 0.0
        %v2604 = vmax.f32 %v2572, 0.0
        %v2605 = vmax.f32 %v2573, 0.0
        %v2606 = vmax.f32 %v2574, 0.0
        %v2607 = vmax.f32 %v2575, 0.0
        %v2608 = vmax.f32 %v2576, 0.0
        %v2609 = vmax.f32 %v2577, 0.0
        %v2610 = vmax.f32 %v2578, 0.0
        %v2611 = vmax.f32 %v2579, 0.0
        %v2612 = vmax.f32 %v2580, 0.0
        %v2613 = vmax.f32 %v2581, 0.0
        %v2614 = vmax.f32 %v2582, 0.0
        %v2615 = vmax.f32 %v2583, 0.0
        %v2616 = vmax.f32 %v2584, 0.0
        %v2617 = vmax.f32 %v2585, 0.0
        %v2618 = vmax.f32 %v2586, 0.0
        %v2619 = vmax.f32 %v2587, 0.0
        %v2620 = vmax.f32 %v2588, 0.0
        %v2621 = vmax.f32 %v2589, 0.0
        %v2622 = vmax.f32 %v2590, 0.0
        %v2623 = vmax.f32 %v2591, 0.0
        %v2624 = vmax.f32 %v2592, 0.0
        %v2625 = vmax.f32 %v2593, 0.0
        %v2626 = vmax.f32 %v2594, 0.0
        %v2627 = vmax.f32 %v2595, 0.0
        %v2628 = vmax.f32 %v2596, 0.0
        %v2629 = vmax.f32 %v2597, 0.0
        %v2630 = vmax.f32 %v2598, 0.0
        %v2631 = vmax.f32 %v2599, 0.0
        %v2632 = vmax.f32 %v2600, 0.0
        %v2633 = vld [vmem:[%s3] sm:$0xff]
        %v2634 = vpack.c.bf16 %v2603, %v2601
        %v2635 = vpack.c.bf16 %v2604, %v2602
        %v2636 = vpack.c.bf16 %v2607, %v2605
        %v2637 = vpack.c.bf16 %v2608, %v2606
        %v2638 = vpack.c.bf16 %v2611, %v2609
        %v2639 = vpack.c.bf16 %v2612, %v2610
        %v2640 = vpack.c.bf16 %v2615, %v2613
        %v2641 = vpack.c.bf16 %v2616, %v2614
        %v2642 = vpack.c.bf16 %v2619, %v2617
        %v2643 = vpack.c.bf16 %v2620, %v2618
        %v2644 = vpack.c.bf16 %v2623, %v2621
        %v2645 = vpack.c.bf16 %v2624, %v2622
        %v2646 = vpack.c.bf16 %v2627, %v2625
        %v2647 = vpack.c.bf16 %v2628, %v2626
        %v2648 = vpack.c.bf16 %v2631, %v2629
        %v2649 = vpack.c.bf16 %v2632, %v2630
        %v2650 = vld [vmem:[%s4] sm:$0x7f]
        %2652 = vset.pattern.permute.xlu0 0
        %2653 = vperm.xlu0 %2652, %v2650
        %v2654 = vpop.permute.xlu0 %2653
        %v2657 = vunpack.c.l.b16 %v2633
        %v2658 = vunpack.c.h.b16 %v2633
        %v2659 = vpack.c.b16 %v2657, %v2657
        %v2660 = vpack.c.b16 %v2658, %v2658
        %2663 = vmatpush.bf16.xpose.msra.mxu0 %v2648
        %2664 = vmatpush.bf16.xpose.msra.mxu0 %v2646
        %2665 = vmatpush.bf16.xpose.msra.mxu0 %v2644
        %2666 = vmatpush.bf16.xpose.msra.mxu0 %v2642
        %2667 = vmatpush.bf16.xpose.msra.mxu0 %v2640
        %2668 = vmatpush.bf16.xpose.msra.mxu0 %v2638
        %2669 = vmatpush.bf16.xpose.msra.mxu0 %v2636
        %2670 = vmatpush.bf16.xpose.msra.mxu0 %v2634
        %2671 = vmatmul.bf16.gmra.mxu0 %v2659
        %v2672 = vpop.f32.mrf.mxu0
        %v2673 = vadd.f32 %v2654, %v2672
        %v2674 = vpop.f32.mrf.mxu0
        %2675 = vdwg.mxu0
        %2676 = vmatpush.bf16.xpose.msra.mxu0 %v2649
        %2677 = vmatpush.bf16.xpose.msra.mxu0 %v2647
        %2678 = vmatpush.bf16.xpose.msra.mxu0 %v2645
        %2679 = vmatpush.bf16.xpose.msra.mxu0 %v2643
        %2680 = vmatpush.bf16.xpose.msra.mxu0 %v2641
        %2681 = vmatpush.bf16.xpose.msra.mxu0 %v2639
        %2682 = vmatpush.bf16.xpose.msra.mxu0 %v2637
        %2683 = vmatpush.bf16.xpose.msra.mxu0 %v2635
        %2684 = vmatmul.bf16.gmra.mxu0 %v2660
        %v2685 = vpop.f32.mrf.mxu0
        %v2686 = vadd.f32 %v2673, %v2685
        %v2687 = vpop.f32.mrf.mxu0
        %2688 = vdwg.mxu0
        %2689 = vst [vmem:[%s297] sm:$0x7f] %v2686
        %p2690 = scmp.lt.s32.totalorder %s24, 1
        %s2691 = scalar_select %p2690, %s24, 1
        %p2692 = scmp.lt.s32.totalorder %s25, 1
        %s2693 = scalar_select %p2692, %s25, 1
        %s2694 = smul.addr %s2691, 2
        %s2695 = sadd.s32 %s2693, %s2694
        %s2696 = smul.addr %s2695, 8
        %s2697 = scalar_lea.vmem %s5, %s2696
        // Predicated region
        $region53: #{tpu_custom_call.1} parent=39 // pred_check
          %p2698 = pneg %p162
        $region54: #{tpu_custom_call.1} parent=39 // pred_check_branch
          %2700 = sbr.rel (%p2698) target = $region56
        $region55: #{tpu_custom_call.1} parent=39 // pred_region
          _
        $region56: #{tpu_custom_call.1} parent=39 // pred_fallthru
          _
      $region40: #{tpu_custom_call.1} parent=5 // pred_fallthru
        _
      %p2701 = scmp.le.s32.totalorder 2, %s15
      // Predicated region
      $region57: #{tpu_custom_call.1} parent=5 // pred_check
        %p2702 = pneg %p2701
      $region58: #{tpu_custom_call.1} parent=5 // pred_check_branch
        %2704 = sbr.rel (%p2702) target = $region60
      $region59: #{tpu_custom_call.1} parent=5 // pred_region
        %s2705 = ssub.s32 %s15, 2
        // Predicated region
        $region61: #{tpu_custom_call.1} parent=59 // pred_check
          %p2706 = pneg %p168
        $region62: #{tpu_custom_call.1} parent=59 // pred_check_branch
          %2708 = sbr.rel (%p2706) target = $region64
        $region63: #{tpu_custom_call.1} parent=59 // pred_region
          %p2709 = scmp.lt.s32.totalorder %s26, 1
          %s2710 = scalar_select %p2709, %s26, 1
          %p2711 = scmp.lt.s32.totalorder %s27, 1
          %s2712 = scalar_select %p2711, %s27, 1
          %s2713 = smul.addr %s2710, 2
          %s2714 = sadd.s32 %s2712, %s2713
          %s2715 = smul.addr %s2714, 8
          %s2716 = scalar_lea.vmem %s5, %s2715
        $region64: #{tpu_custom_call.1} parent=59 // pred_fallthru
          _
      $region60: #{tpu_custom_call.1} parent=5 // pred_fallthru
        _
    $region6: #{tpu_custom_call.1} parent=1 // loop_footer
      %s19 = sadd.s32 1, %s15
    $region7: #{tpu_custom_call.1} parent=1 // loop_footer_branch
      %14 = sbr.rel target = $region3
    $region8: #{tpu_custom_call.1} parent=1 // loop_exit
      _
    %2717 = vsyncpa [#allocation4], 1
    %s2718 = scalar_lea.sflag [#allocation4], 1
    %2719 = vsyncpa %s2718, 1
    %2720 = vsyncpa [#allocation6], 1

</llo_original>
